<compile_context>
chip_gen: v5e
topology: v5e:2x2
jax: 0.10.0
libtpu: 0.0.40
codegen_flags: <defaults>
</compile_context>

<pallas_src>
import functools

import jax
import jax.numpy as jnp
from jax import lax
from jax.experimental import pallas as pl
from jax.experimental.pallas import tpu as pltpu


def _mrf_loss_kernel(gen_ref, tar_ref, o_ref, tarn_ref, meant_ref, rowmax_ref,
                     *, bias, inv_sigma, eps, norm_eps, tile_g):
    """ID-MRF core for one (batch b, gen-pixel tile j) grid step.

    gen_ref:    (tile_g, C) gen features for spatial rows [j*tile_g, (j+1)*tile_g).
    tar_ref:    (N, C) target features for batch b, resident across the j axis.
    o_ref:      (8, 128) per-batch output tile; div_mrf broadcast at the last j.
    tarn_ref:   (N, C) bf16 scratch: normalized target features (built at j==0).
    meant_ref:  (N, 1) f32 scratch: per-pixel target channel mean.
    rowmax_ref: (N, 1) f32 scratch: running max over gen pixels of cs.
    """
    j = pl.program_id(1)
    n_tiles = pl.num_programs(1)

    # ---- once per batch element: center + L2-normalize the target features. ----
    @pl.when(j == 0)
    def _():
        tar = tar_ref[...]                                       # (N, C) f32
        mean_t = jnp.mean(tar, axis=1, keepdims=True)            # (N, 1)
        tar_f = tar - mean_t
        tar_n = tar_f * lax.rsqrt(
            jnp.sum(tar_f * tar_f, axis=1, keepdims=True) + norm_eps)
        tarn_ref[...] = tar_n.astype(jnp.bfloat16)
        meant_ref[...] = mean_t
        rowmax_ref[...] = jnp.zeros(rowmax_ref.shape, rowmax_ref.dtype)

    # ---- normalize this gen tile (centered by the target mean at the SAME rows). ----
    row0 = j * tile_g
    if tile_g % 8 == 0:                       # static branch; alignment hint only
        row0 = pl.multiple_of(row0, 8)
    mean_t_tile = meant_ref[pl.ds(row0, tile_g), :]              # (tile_g, 1)
    gen = gen_ref[...]                                           # (tile_g, C)
    gen_f = gen - mean_t_tile
    gen_n = gen_f * lax.rsqrt(
        jnp.sum(gen_f * gen_f, axis=1, keepdims=True) + norm_eps)

    # ---- all-pairs cosine similarity: bf16 MXU matmul, f32 accumulation. ----
    # F.conv2d(gen, 1x1-patches(tar)) == tar_n @ gen_n^T.
    s = lax.dot_general(tarn_ref[...], gen_n.astype(jnp.bfloat16),
                        (((1,), (1,)), ((), ())),
                        preferred_element_type=jnp.float32)      # (N_t, tile_g)

    # ---- fused relative-distance + exp normalization. ----
    # d = 0.5*(1-s) is monotone decreasing in s, so the per-gen-pixel (column)
    # min over targets is d_min = 0.5*(1 - max_t s).  Then
    #   exp((bias - d/(d_min+eps)) * inv_sigma) == exp(a_col + b_col * s)
    # with per-column vectors a_col/b_col: 1 FMA + 1 exp + 1 mul per element.
    s_max = jnp.minimum(jnp.max(s, axis=0, keepdims=True), 1.0)  # (1, tile_g)
    recip = pl.reciprocal(0.5 * (1.0 - s_max) + eps, approx=True)
    b_col = (0.5 * inv_sigma) * recip
    a_col = bias * inv_sigma - b_col
    e = jnp.exp(a_col + b_col * s)
    cs = e * pl.reciprocal(jnp.sum(e, axis=0, keepdims=True), approx=True)

    # Running per-target max over gen pixels.  Exact under the tiling: the
    # column-wise min/sum above are complete within a tile because the full
    # target axis is present.
    rowmax_ref[...] = jnp.maximum(rowmax_ref[...],
                                  jnp.max(cs, axis=1, keepdims=True))

    # ---- epilogue: mean over targets -> per-batch div_mrf. ----
    @pl.when(j == n_tiles - 1)
    def _():
        inv_nt = 1.0 / rowmax_ref.shape[0]
        div_mrf = jnp.sum(rowmax_ref[...], keepdims=True) * inv_nt   # (1, 1)
        o_ref[...] = jnp.broadcast_to(div_mrf, o_ref.shape)


def _pick_tile_g(n, target=512):
    """Largest gen-pixel tile <= target that divides n and is a multiple of 8
    (falls back to the full extent)."""
    if n <= target:
        return n
    t = (target // 8) * 8
    while t >= 8:
        if n % t == 0:
            return t
        t -= 8
    return n


def _mrf_div(gen, tar, *, bias, nn_stretch_sigma, tile_g=None):
    """div_mrf per batch element via the Pallas kernel. gen/tar: (B, C, H, W)."""
    bsz, c, h, w = gen.shape
    n = h * w
    # NCHW -> (B, N, C): spatial on sublanes, channels on lanes.
    # TODO(synk): contracting channels on the sublane axis ((B, C, N) layout)
    # would avoid this transpose pass and the lane padding for small C, but
    # needs an MXU-lowering check (lower_as_mlir) before switching.
    gen_nc = jnp.transpose(gen.reshape(bsz, c, n), (0, 2, 1)).astype(jnp.float32)
    tar_nc = jnp.transpose(tar.reshape(bsz, c, n), (0, 2, 1)).astype(jnp.float32)

    if tile_g is None:
        tile_g = _pick_tile_g(n)
    if n % tile_g != 0:
        raise ValueError(f"tile_g={tile_g} must divide N={n}")
    n_tiles = n // tile_g

    kernel = functools.partial(
        _mrf_loss_kernel,
        bias=float(bias),
        inv_sigma=float(1.0 / nn_stretch_sigma),
        eps=1e-5,
        norm_eps=1e-12,
        tile_g=tile_g,
    )

    cost = pl.CostEstimate(
        flops=int(2 * bsz * n * n * c + 6 * bsz * n * n),
        transcendentals=int(bsz * n * n),
        bytes_accessed=int(2 * bsz * n * c * 4 + bsz * 8 * 128 * 4),
    )

    # VMEM budget: double-buffered input blocks + scratch + a few live
    # (N, tile_g) f32 temporaries; clamped under v7x's 64 MiB physical VMEM.
    vmem_est = (2 * 4 * (n * c + tile_g * c)      # input blocks (x2 buffers)
                + 2 * n * c + 2 * 4 * n           # scratches
                + 3 * 4 * n * tile_g              # s / e / cs temporaries
                + 2 * 4 * 8 * 128)                # output block
    vmem_limit = int(min(max(vmem_est * 3 // 2, 32 * 1024 * 1024),
                         60 * 1024 * 1024))

    out = pl.pallas_call(
        kernel,
        out_shape=jax.ShapeDtypeStruct((bsz, 8, 128), jnp.float32),
        grid=(bsz, n_tiles),
        in_specs=[
            # gen: tiled along the gen-pixel axis; last dim equals full C.
            pl.BlockSpec((None, tile_g, c), lambda b, j: (b, j, 0)),
            # tar: full (N, C) block, resident across the j (tile) axis.
            pl.BlockSpec((None, n, c), lambda b, j: (b, 0, 0)),
        ],
        # Per-batch (8,128) lane-dense output tile -> safe with a "parallel"
        # batch axis (no shared-SMEM write hazard); wrapper reads [:, 0, 0].
        out_specs=pl.BlockSpec((None, 8, 128), lambda b, j: (b, 0, 0)),
        scratch_shapes=[
            pltpu.VMEM((n, c), jnp.bfloat16),   # normalized target features
            pltpu.VMEM((n, 1), jnp.float32),    # target channel means
            pltpu.VMEM((n, 1), jnp.float32),    # running row-max of cs
        ],
        compiler_params=pltpu.CompilerParams(
            dimension_semantics=("parallel", "arbitrary"),
            vmem_limit_bytes=vmem_limit,
        ),
        cost_estimate=cost,
    )(gen_nc, tar_nc)
    return out[:, 0, 0]


class IDMRFLossJAX:
    """JAX/Pallas mirror of IDMRFLoss (operating on precomputed VGG features)."""

    def __init__(self):
        self.feat_style_layers = {'relu3_2': 1.0, 'relu4_2': 1.0}
        self.feat_content_layers = {'relu4_2': 1.0}
        self.bias = 1.0
        self.nn_stretch_sigma = 0.5
        self.lambda_style = 1.0
        self.lambda_content = 1.0

    def mrf_loss(self, gen, tar):
        div_mrf = _mrf_div(gen, tar, bias=self.bias,
                           nn_stretch_sigma=self.nn_stretch_sigma)
        return jnp.sum(-jnp.log(div_mrf))

    def forward(self, gen_vgg_feats, tar_vgg_feats):
        style_terms = [w * self.mrf_loss(gen_vgg_feats[l], tar_vgg_feats[l])
                       for l, w in self.feat_style_layers.items()]
        self.style_loss = functools.reduce(lambda a, b: a + b, style_terms) * self.lambda_style
        content_terms = [w * self.mrf_loss(gen_vgg_feats[l], tar_vgg_feats[l])
                         for l, w in self.feat_content_layers.items()]
        self.content_loss = functools.reduce(lambda a, b: a + b, content_terms) * self.lambda_content
        return self.style_loss + self.content_loss


def _div_mrf_ref(gen, tar, bias=1.0, sigma=0.5, eps=1e-5):
    """Pure-JAX reference of div_mrf per batch element (mirrors the PyTorch math)."""
    bsz, c, h, w = gen.shape
    n = h * w
    mean_t = jnp.mean(tar, axis=1, keepdims=True)
    gen_f, tar_f = gen - mean_t, tar - mean_t
    gen_n = gen_f / jnp.sqrt(jnp.sum(gen_f * gen_f, axis=1, keepdims=True))
    tar_n = tar_f / jnp.sqrt(jnp.sum(tar_f * tar_f, axis=1, keepdims=True))
    g = gen_n.reshape(bsz, c, n)
    t = tar_n.reshape(bsz, c, n)
    s = jnp.einsum('bct,bcg->btg', t, g, precision=lax.Precision.HIGHEST)
    d = (1.0 - s) * 0.5
    rel = d / (jnp.min(d, axis=1, keepdims=True) + eps)
    e = jnp.exp((bias - rel) / sigma)
    cs = e / jnp.sum(e, axis=1, keepdims=True)
    k_max = jnp.max(cs, axis=2)                       # (B, N_t)
    return jnp.mean(k_max, axis=1)                    # (B,)


def _mrf_loss_ref(gen, tar, **kw):
    return jnp.sum(-jnp.log(_div_mrf_ref(gen, tar, **kw)))


if __name__ == "__main__":
    key = jax.random.PRNGKey(0)
    k1, k2, k3, k4 = jax.random.split(key, 4)
    # Small stand-in VGG feature maps (relu3_2-like and relu4_2-like shapes).
    gen_feats = {
        'relu3_2': jax.random.normal(k1, (2, 32, 16, 16), dtype=jnp.float32),
        'relu4_2': jax.random.normal(k2, (2, 64, 8, 8), dtype=jnp.float32),
    }
    tar_feats = {
        'relu3_2': jax.random.normal(k3, (2, 32, 16, 16), dtype=jnp.float32),
        'relu4_2': jax.random.normal(k4, (2, 64, 8, 8), dtype=jnp.float32),
    }

    loss_mod = IDMRFLossJAX()
    loss = jax.block_until_ready(loss_mod.forward(gen_feats, tar_feats))

    # Reference: style (relu3_2 + relu4_2) + content (relu4_2), all weights 1.0.
    ref = (_mrf_loss_ref(gen_feats['relu3_2'], tar_feats['relu3_2'])
           + 2.0 * _mrf_loss_ref(gen_feats['relu4_2'], tar_feats['relu4_2']))

    assert jnp.isfinite(loss), loss
    assert jnp.allclose(loss, ref, rtol=2e-2, atol=2e-2), (loss, ref)

    # Explicitly exercise the gen-pixel tiling path (N=256 split into 4 tiles).
    div_tiled = jax.block_until_ready(
        _mrf_div(gen_feats['relu3_2'], tar_feats['relu3_2'],
                 bias=1.0, nn_stretch_sigma=0.5, tile_g=64))
    div_ref = _div_mrf_ref(gen_feats['relu3_2'], tar_feats['relu3_2'])
    assert jnp.allclose(div_tiled, div_ref, rtol=5e-2, atol=1e-3), (div_tiled, div_ref)

    print("KERNEL_OK")
</pallas_src>

<mosaic_0001>
module attributes {stable_mosaic.version = 11 : i64} {
  func.func @_mrf_loss_kernel(%arg0: i32, %arg1: i32, %arg2: memref<1x256x32xf32, #tpu.memory_space<vmem>>, %arg3: memref<1x256x32xf32, #tpu.memory_space<vmem>>, %arg4: memref<1x8x128xf32, #tpu.memory_space<vmem>>, %arg5: memref<256x32xbf16, #tpu.memory_space<vmem>>, %arg6: memref<256x1xf32, #tpu.memory_space<vmem>>, %arg7: memref<256x1xf32, #tpu.memory_space<vmem>>) attributes {dimension_semantics = [#tpu.dimension_semantics<parallel>, #tpu.dimension_semantics<arbitrary>], iteration_bounds = array<i64: 2, 1>, scalar_prefetch = 0 : i64, scratch_operands = 3 : i64, tpu.core_type = #tpu.core_type<tc>, window_params = [{transform_indices = @transform_0, window_bounds = array<i64: 1, 256, 32>}, {transform_indices = @transform_1, window_bounds = array<i64: 1, 256, 32>}, {transform_indices = @transform_2, window_bounds = array<i64: 1, 8, 128>}]} {
    %c0_i32 = arith.constant 0 : i32
    %0 = arith.cmpi eq, %arg1, %c0_i32 : i32
    %1 = arith.extui %0 : i1 to i32
    %c0_i32_0 = arith.constant 0 : i32
    %2 = arith.cmpi ne, %1, %c0_i32_0 : i32
    scf.if %2 {
      %c0_23 = arith.constant 0 : index
      %c0_24 = arith.constant 0 : index
      %c0_25 = arith.constant 0 : index
      %55 = vector.load %arg3[%c0_23, %c0_24, %c0_25] : memref<1x256x32xf32, #tpu.memory_space<vmem>>, vector<1x256x32xf32>
      %56 = vector.shape_cast %55 : vector<1x256x32xf32> to vector<256x32xf32>
      %cst_26 = arith.constant dense<0.000000e+00> : vector<256xf32>
      %57 = vector.multi_reduction <add>, %56, %cst_26 [1] : vector<256x32xf32> to vector<256xf32>
      %58 = vector.shape_cast %57 : vector<256xf32> to vector<256x1xf32>
      %cst_27 = arith.constant 3.200000e+01 : f32
      %59 = vector.broadcast %cst_27 : f32 to vector<256x1xf32>
      %60 = arith.divf %58, %59 : vector<256x1xf32>
      %61 = vector.broadcast %60 : vector<256x1xf32> to vector<256x32xf32>
      %62 = arith.subf %56, %61 : vector<256x32xf32>
      %63 = arith.mulf %62, %62 : vector<256x32xf32>
      %cst_28 = arith.constant dense<0.000000e+00> : vector<256xf32>
      %64 = vector.multi_reduction <add>, %63, %cst_28 [1] : vector<256x32xf32> to vector<256xf32>
      %65 = vector.shape_cast %64 : vector<256xf32> to vector<256x1xf32>
      %cst_29 = arith.constant 9.99999996E-13 : f32
      %66 = vector.broadcast %cst_29 : f32 to vector<256x1xf32>
      %67 = arith.addf %65, %66 : vector<256x1xf32>
      %68 = math.rsqrt %67 : vector<256x1xf32>
      %69 = vector.broadcast %68 : vector<256x1xf32> to vector<256x32xf32>
      %70 = arith.mulf %62, %69 : vector<256x32xf32>
      %71 = arith.truncf %70 : vector<256x32xf32> to vector<256x32xbf16>
      %c0_30 = arith.constant 0 : index
      %c0_31 = arith.constant 0 : index
      %72 = vector.load %arg5[%c0_30, %c0_31] : memref<256x32xbf16, #tpu.memory_space<vmem>>, vector<256x32xbf16>
      tpu.vector_store %arg5[%c0_30, %c0_31], %71 {strides = array<i32>} : memref<256x32xbf16, #tpu.memory_space<vmem>>, vector<256x32xbf16>,
      %c0_32 = arith.constant 0 : index
      %c0_33 = arith.constant 0 : index
      %73 = vector.load %arg6[%c0_32, %c0_33] : memref<256x1xf32, #tpu.memory_space<vmem>>, vector<256x1xf32>
      tpu.vector_store %arg6[%c0_32, %c0_33], %60 {strides = array<i32>} : memref<256x1xf32, #tpu.memory_space<vmem>>, vector<256x1xf32>,
      %cst_34 = arith.constant 0.000000e+00 : f32
      %74 = vector.broadcast %cst_34 : f32 to vector<256x1xf32>
      %c0_35 = arith.constant 0 : index
      %c0_36 = arith.constant 0 : index
      %75 = vector.load %arg7[%c0_35, %c0_36] : memref<256x1xf32, #tpu.memory_space<vmem>>, vector<256x1xf32>
      tpu.vector_store %arg7[%c0_35, %c0_36], %74 {strides = array<i32>} : memref<256x1xf32, #tpu.memory_space<vmem>>, vector<256x1xf32>,
    } else {
    }
    %c256_i32 = arith.constant 256 : i32
    %3 = arith.muli %arg1, %c256_i32 : i32
    %4 = tpu.assume_multiple %3, 8 : i32
    %5 = arith.index_cast %4 : i32 to index
    %c0 = arith.constant 0 : index
    %6 = vector.load %arg6[%5, %c0] : memref<256x1xf32, #tpu.memory_space<vmem>>, vector<256x1xf32>
    %c0_1 = arith.constant 0 : index
    %c0_2 = arith.constant 0 : index
    %c0_3 = arith.constant 0 : index
    %7 = vector.load %arg2[%c0_1, %c0_2, %c0_3] : memref<1x256x32xf32, #tpu.memory_space<vmem>>, vector<1x256x32xf32>
    %8 = vector.shape_cast %7 : vector<1x256x32xf32> to vector<256x32xf32>
    %9 = vector.broadcast %6 : vector<256x1xf32> to vector<256x32xf32>
    %10 = arith.subf %8, %9 : vector<256x32xf32>
    %11 = arith.mulf %10, %10 : vector<256x32xf32>
    %cst = arith.constant dense<0.000000e+00> : vector<256xf32>
    %12 = vector.multi_reduction <add>, %11, %cst [1] : vector<256x32xf32> to vector<256xf32>
    %13 = vector.shape_cast %12 : vector<256xf32> to vector<256x1xf32>
    %cst_4 = arith.constant 9.99999996E-13 : f32
    %14 = vector.broadcast %cst_4 : f32 to vector<256x1xf32>
    %15 = arith.addf %13, %14 : vector<256x1xf32>
    %16 = math.rsqrt %15 : vector<256x1xf32>
    %17 = vector.broadcast %16 : vector<256x1xf32> to vector<256x32xf32>
    %18 = arith.mulf %10, %17 : vector<256x32xf32>
    %c0_5 = arith.constant 0 : index
    %c0_6 = arith.constant 0 : index
    %19 = vector.load %arg5[%c0_5, %c0_6] : memref<256x32xbf16, #tpu.memory_space<vmem>>, vector<256x32xbf16>
    %20 = arith.truncf %18 : vector<256x32xf32> to vector<256x32xbf16>
    %cst_7 = arith.constant dense<0.000000e+00> : vector<256x256xf32>
    %21 = tpu.matmul %19, %20, %cst_7 {dimension_numbers = #tpu.dot_dimension_numbers<[1], [1], [0], [0], [0, 0, 1, 0], [], []>} : vector<256x32xbf16>, vector<256x32xbf16>, vector<256x256xf32> -> vector<256x256xf32>
    %cst_8 = arith.constant dense<0xFF800000> : vector<256xf32>
    %22 = vector.multi_reduction <maximumf>, %21, %cst_8 [0] : vector<256x256xf32> to vector<256xf32>
    %23 = vector.shape_cast %22 : vector<256xf32> to vector<1x256xf32>
    %cst_9 = arith.constant 1.000000e+00 : f32
    %24 = vector.broadcast %cst_9 : f32 to vector<1x256xf32>
    %25 = arith.minimumf %23, %24 : vector<1x256xf32>
    %cst_10 = arith.constant 1.000000e+00 : f32
    %26 = vector.broadcast %cst_10 : f32 to vector<1x256xf32>
    %27 = arith.subf %26, %25 : vector<1x256xf32>
    %cst_11 = arith.constant 5.000000e-01 : f32
    %28 = vector.broadcast %cst_11 : f32 to vector<1x256xf32>
    %29 = arith.mulf %28, %27 : vector<1x256xf32>
    %cst_12 = arith.constant 9.99999974E-6 : f32
    %30 = vector.broadcast %cst_12 : f32 to vector<1x256xf32>
    %31 = arith.addf %29, %30 : vector<1x256xf32>
    %32 = tpu.reciprocal %31 {approx = true} : vector<1x256xf32> -> vector<1x256xf32>
    %cst_13 = arith.constant 1.000000e+00 : f32
    %33 = vector.broadcast %cst_13 : f32 to vector<1x256xf32>
    %34 = arith.mulf %33, %32 : vector<1x256xf32>
    %cst_14 = arith.constant 2.000000e+00 : f32
    %35 = vector.broadcast %cst_14 : f32 to vector<1x256xf32>
    %36 = arith.subf %35, %34 : vector<1x256xf32>
    %37 = vector.broadcast %34 : vector<1x256xf32> to vector<256x256xf32>
    %38 = arith.mulf %37, %21 : vector<256x256xf32>
    %39 = vector.broadcast %36 : vector<1x256xf32> to vector<256x256xf32>
    %40 = arith.addf %39, %38 : vector<256x256xf32>
    %41 = math.exp %40 : vector<256x256xf32>
    %cst_15 = arith.constant dense<0.000000e+00> : vector<256xf32>
    %42 = vector.multi_reduction <add>, %41, %cst_15 [0] : vector<256x256xf32> to vector<256xf32>
    %43 = vector.shape_cast %42 : vector<256xf32> to vector<1x256xf32>
    %44 = tpu.reciprocal %43 {approx = true} : vector<1x256xf32> -> vector<1x256xf32>
    %45 = vector.broadcast %44 : vector<1x256xf32> to vector<256x256xf32>
    %46 = arith.mulf %41, %45 : vector<256x256xf32>
    %c0_16 = arith.constant 0 : index
    %c0_17 = arith.constant 0 : index
    %47 = vector.load %arg7[%c0_16, %c0_17] : memref<256x1xf32, #tpu.memory_space<vmem>>, vector<256x1xf32>
    %cst_18 = arith.constant dense<0xFF800000> : vector<256xf32>
    %48 = vector.multi_reduction <maximumf>, %46, %cst_18 [1] : vector<256x256xf32> to vector<256xf32>
    %49 = vector.shape_cast %48 : vector<256xf32> to vector<256x1xf32>
    %50 = arith.maximumf %47, %49 : vector<256x1xf32>
    %c0_19 = arith.constant 0 : index
    %c0_20 = arith.constant 0 : index
    %51 = vector.load %arg7[%c0_19, %c0_20] : memref<256x1xf32, #tpu.memory_space<vmem>>, vector<256x1xf32>
    tpu.vector_store %arg7[%c0_19, %c0_20], %50 {strides = array<i32>} : memref<256x1xf32, #tpu.memory_space<vmem>>, vector<256x1xf32>,
    %c0_i32_21 = arith.constant 0 : i32
    %52 = arith.cmpi eq, %arg1, %c0_i32_21 : i32
    %53 = arith.extui %52 : i1 to i32
    %c0_i32_22 = arith.constant 0 : i32
    %54 = arith.cmpi ne, %53, %c0_i32_22 : i32
    scf.if %54 {
      %c0_23 = arith.constant 0 : index
      %c0_24 = arith.constant 0 : index
      %55 = vector.load %arg7[%c0_23, %c0_24] : memref<256x1xf32, #tpu.memory_space<vmem>>, vector<256x1xf32>
      %56 = vector.shape_cast %55 : vector<256x1xf32> to vector<1x256x1xf32>
      %cst_25 = arith.constant dense<0.000000e+00> : vector<1xf32>
      %57 = vector.multi_reduction <add>, %56, %cst_25 [1, 2] : vector<1x256x1xf32> to vector<1xf32>
      %58 = vector.shape_cast %57 : vector<1xf32> to vector<1x1x1xf32>
      %59 = vector.extract %58[0, 0, 0] : f32 from vector<1x1x1xf32>
      %60 = vector.broadcast %59 : f32 to vector<1x1xf32>
      %cst_26 = arith.constant 3.906250e-03 : f32
      %61 = vector.broadcast %cst_26 : f32 to vector<1x1xf32>
      %62 = arith.mulf %60, %61 : vector<1x1xf32>
      %63 = vector.shape_cast %62 : vector<1x1xf32> to vector<1x1xf32>
      %64 = vector.broadcast %63 : vector<1x1xf32> to vector<8x128xf32>
      %c0_27 = arith.constant 0 : index
      %c0_28 = arith.constant 0 : index
      %c0_29 = arith.constant 0 : index
      %65 = vector.load %arg4[%c0_27, %c0_28, %c0_29] : memref<1x8x128xf32, #tpu.memory_space<vmem>>, vector<1x8x128xf32>
      %66 = vector.shape_cast %65 : vector<1x8x128xf32> to vector<8x128xf32>
      %67 = vector.shape_cast %64 : vector<8x128xf32> to vector<1x8x128xf32>
      tpu.vector_store %arg4[%c0_27, %c0_28, %c0_29], %67 {strides = array<i32>} : memref<1x8x128xf32, #tpu.memory_space<vmem>>, vector<1x8x128xf32>,
    } else {
    }
    return
  }
  func.func @transform_0(%arg0: i32, %arg1: i32) -> (i32, i32, i32) {
    %c0_i32 = arith.constant 0 : i32
    %c0_i32_0 = arith.constant 0 : i32
    return %arg0, %arg1, %c0_i32 : i32, i32, i32
  }
  func.func @transform_1(%arg0: i32, %arg1: i32) -> (i32, i32, i32) {
    %c0_i32 = arith.constant 0 : i32
    %c0_i32_0 = arith.constant 0 : i32
    %c0_i32_1 = arith.constant 0 : i32
    return %arg0, %c0_i32, %c0_i32_0 : i32, i32, i32
  }
  func.func @transform_2(%arg0: i32, %arg1: i32) -> (i32, i32, i32) {
    %c0_i32 = arith.constant 0 : i32
    %c0_i32_0 = arith.constant 0 : i32
    %c0_i32_1 = arith.constant 0 : i32
    return %arg0, %c0_i32, %c0_i32_0 : i32, i32, i32
  }
}

</mosaic_0001>

<llo_original>
// kernel: tpu_custom_call.1
$region0: #{tpu_custom_call.1}
  #allocation0 [shape = 'u32[]', space=smem, size = 0x4, offset = 0x4, fixed_abs, tag = 'smem constant byte address 0x4 - core index']
  #allocation1 [shape = 'u32[72,128]{1,0:T(1,128)}', space=vmem, size = 0x9000, scoped, tag = 'internal scratch']
  #allocation2 [shape = 'bf16[256,32]{1,0:T(8,128)(2,1)}', space=vmem, size = 0x10000, scoped, tag = 'scratch operand']
  #allocation3 [shape = 'f32[256,1]{1,0:T(8,128)}', space=vmem, size = 0x20000, scoped, tag = 'scratch operand']
  #allocation4 [shape = 'f32[256,1]{1,0:T(8,128)}', space=vmem, size = 0x20000, scoped, tag = 'scratch operand']
  %s0 = inlined_call_operand.vmem [shape: f32[2,256,32], index: 0, kind: input, shape index: {}]
  %s1 = inlined_call_operand.vmem [shape: f32[2,256,32], index: 1, kind: input, shape index: {}]
  %s2 = inlined_call_operand.hbm [shape: f32[2,8,128], index: 2, kind: output, shape index: {}]
  %s3 = sld [smem:[#allocation0]]
  $region49: #{tpu_custom_call.1} parent=0
    _
  %s5 = ssub.s32 1, %s3
  %s6 = scalar_select 0, %s5, %s3
  $region1: #{tpu_custom_call.1} parent=0
    #allocation5 [shape = 'u8[8192]{0}', space=vmem, size = 0x2000, scoped, tag = 'output window, operand 0']
    #allocation6 [shape = 's32[2]{0}', space=sflag, size = 0x8, scoped, tag = 'scoped memory for tpu_custom_call.1']
    %7 = vsyncpa [#allocation6], 0
    %s8 = scalar_lea.sflag [#allocation6], 1
    %9 = vsyncpa %s8, 0
    loop: start=0, step=1, limit=4
    $region2: #{tpu_custom_call.1} parent=1 // loop_pre_header
      _
    $region3: #{tpu_custom_call.1} parent=1 // loop_header
      %s11 = sphi 0, %s15
      %p12 = scmp.ge.s32.totalorder %s11, 4
      %s18 = sphi 0, %s30
      %s19 = sphi 0, %s26
      %s20 = sphi 0, %s18
      %s21 = sphi 0, %s19
      %s22 = sphi 0, %s20
      %s23 = sphi 0, %s21
      %s35 = sphi 0, %s37
      %s38 = sphi 0, %s35
      %s39 = sphi 0, %s38
      %s55 = sphi 0, %s39
      %s61 = sphi 0, %s63
      %s64 = sphi 0, %s61
      %s65 = sphi 0, %s64
      %s81 = sphi 0, %s65
      %s87 = sphi 0, %s89
      %s90 = sphi 0, %s87
      %s91 = sphi 0, %s90
      %s107 = sphi 0, %s91
    $region4: #{tpu_custom_call.1} parent=1 // loop_header_branch
      %14 = sbr.rel (%p12) target = $region8
    $region5: #{tpu_custom_call.1} parent=1 // loop_body
      %s16 = ssub.s32 %s11, 1
      %s17 = ssub.s32 %s11, 2
      %s24 = sadd.s32 1, %s19
      %p25 = scmp.ge.s32.totalorder %s24, 1
      %s26 = scalar_select %p25, 0, %s24
      %s27 = sadd.s32 1, %s18
      %s28 = scalar_select %p25, %s27, %s18
      %p29 = scmp.ge.s32.totalorder %s28, 2
      %s30 = scalar_select %p29, 0, %s28
      %s31 = ssub.s32 %s18, %s30
      %s32 = ssub.s32 %s19, %s26
      %s33 = sor.u32 %s31, %s32
      %p34 = scmp.eq.s32.totalorder %s33, 0
      %s36 = sadd.s32 %s35, 1
      %s37 = scalar_select %p34, %s35, %s36
      %p40 = pneg %p34
      %p41 = scmp.eq.s32.totalorder %s11, 1
      %p42 = por %p40, %p41
      %p43 = scmp.ne.s32.totalorder %s35, %s38
      %p44 = scmp.eq.s32.totalorder %s11, 0
      %p45 = por %p43, %p44
      %p46 = scmp.ne.s32.totalorder %s35, %s38
      %p47 = scmp.eq.s32.totalorder %s16, 1
      %p48 = por %p46, %p47
      %p49 = scmp.ne.s32.totalorder %s38, %s39
      %p50 = scmp.eq.s32.totalorder %s16, 0
      %p51 = por %p49, %p50
      %p52 = scmp.ne.s32.totalorder %s38, %s39
      %p53 = scmp.eq.s32.totalorder %s17, 1
      %p54 = por %p52, %p53
      %p56 = scmp.ne.s32.totalorder %s39, %s55
      %p57 = scmp.eq.s32.totalorder %s17, 0
      %p58 = por %p56, %p57
      %s59 = ssub.s32 %s18, %s30
      %p60 = scmp.eq.s32.totalorder %s59, 0
      %s62 = sadd.s32 %s61, 1
      %s63 = scalar_select %p60, %s61, %s62
      %p66 = pneg %p60
      %p67 = scmp.eq.s32.totalorder %s11, 1
      %p68 = por %p66, %p67
      %p69 = scmp.ne.s32.totalorder %s61, %s64
      %p70 = scmp.eq.s32.totalorder %s11, 0
      %p71 = por %p69, %p70
      %p72 = scmp.ne.s32.totalorder %s61, %s64
      %p73 = scmp.eq.s32.totalorder %s16, 1
      %p74 = por %p72, %p73
      %p75 = scmp.ne.s32.totalorder %s64, %s65
      %p76 = scmp.eq.s32.totalorder %s16, 0
      %p77 = por %p75, %p76
      %p78 = scmp.ne.s32.totalorder %s64, %s65
      %p79 = scmp.eq.s32.totalorder %s17, 1
      %p80 = por %p78, %p79
      %p82 = scmp.ne.s32.totalorder %s65, %s81
      %p83 = scmp.eq.s32.totalorder %s17, 0
      %p84 = por %p82, %p83
      %s85 = ssub.s32 %s18, %s30
      %p86 = scmp.eq.s32.totalorder %s85, 0
      %s88 = sadd.s32 %s87, 1
      %s89 = scalar_select %p86, %s87, %s88
      %p92 = pneg %p86
      %p93 = scmp.eq.s32.totalorder %s11, 1
      %p94 = por %p92, %p93
      %p95 = scmp.ne.s32.totalorder %s87, %s90
      %p96 = scmp.eq.s32.totalorder %s11, 0
      %p97 = por %p95, %p96
      %p98 = scmp.ne.s32.totalorder %s87, %s90
      %p99 = scmp.eq.s32.totalorder %s16, 1
      %p100 = por %p98, %p99
      %p101 = scmp.ne.s32.totalorder %s90, %s91
      %p102 = scmp.eq.s32.totalorder %s16, 0
      %p103 = por %p101, %p102
      %p104 = scmp.ne.s32.totalorder %s90, %s91
      %p105 = scmp.eq.s32.totalorder %s17, 1
      %p106 = por %p104, %p105
      %p108 = scmp.ne.s32.totalorder %s91, %s107
      %p109 = scmp.eq.s32.totalorder %s17, 0
      %p110 = por %p108, %p109
      %p111 = scmp.le.s32.totalorder 1, %s11
      %p112 = scmp.lt.s32.totalorder %s11, 3
      %p113 = pnand %p111, %p112
      %p114 = pneg %p113
      // Predicated region
      $region9: #{tpu_custom_call.1} parent=5 // pred_check
        _
      $region10: #{tpu_custom_call.1} parent=5 // pred_check_branch
        %116 = sbr.rel (%p113) target = $region12
      $region11: #{tpu_custom_call.1} parent=5 // pred_region
        %s117 = ssub.s32 %s11, 1
      $region12: #{tpu_custom_call.1} parent=5 // pred_fallthru
        _
      %p118 = scmp.lt.s32.totalorder %s11, 2
      // Predicated region
      $region13: #{tpu_custom_call.1} parent=5 // pred_check
        %p119 = pneg %p118
      $region14: #{tpu_custom_call.1} parent=5 // pred_check_branch
        %121 = sbr.rel (%p119) target = $region16
      $region15: #{tpu_custom_call.1} parent=5 // pred_region
        // Predicated region
        $region17: #{tpu_custom_call.1} parent=15 // pred_check
          %p122 = pneg %p45
        $region18: #{tpu_custom_call.1} parent=15 // pred_check_branch
          %124 = sbr.rel (%p122) target = $region20
        $region19: #{tpu_custom_call.1} parent=15 // pred_region
          %s125 = smul.u32 32, %s19
          %p126 = scmp.lt.s32.totalorder %s18, 1
          %s127 = scalar_select %p126, %s18, 1
          %p128 = scmp.lt.s32.totalorder %s125, 31
          %s129 = scalar_select %p128, %s125, 31
          %s130 = smul.addr %s127, 32
          %s131 = sadd.s32 %s129, %s130
          %s132 = smul.addr %s131, 8
          %s133 = scalar_lea.vmem %s0, %s132
          %s134 = smul.u32 32, %s19
        $region20: #{tpu_custom_call.1} parent=15 // pred_fallthru
          _
        // Predicated region
        $region21: #{tpu_custom_call.1} parent=15 // pred_check
          %p135 = pneg %p71
        $region22: #{tpu_custom_call.1} parent=15 // pred_check_branch
          %137 = sbr.rel (%p135) target = $region24
        $region23: #{tpu_custom_call.1} parent=15 // pred_region
          %p138 = scmp.lt.s32.totalorder %s18, 1
          %s139 = scalar_select %p138, %s18, 1
          %s140 = smul.addr %s139, 32
          %s141 = smul.addr %s140, 8
          %s142 = scalar_lea.vmem %s1, %s141
        $region24: #{tpu_custom_call.1} parent=15 // pred_fallthru
          _
      $region16: #{tpu_custom_call.1} parent=5 // pred_fallthru
        _
      %p143 = scmp.le.s32.totalorder 1, %s11
      %p144 = scmp.lt.s32.totalorder %s11, 3
      %p145 = pnand %p143, %p144
      %p146 = pneg %p145
      // Predicated region
      $region25: #{tpu_custom_call.1} parent=5 // pred_check
        _
      $region26: #{tpu_custom_call.1} parent=5 // pred_check_branch
        %148 = sbr.rel (%p145) target = $region28
      $region27: #{tpu_custom_call.1} parent=5 // pred_region
        %s149 = ssub.s32 %s11, 1
        %s150 = smul.u32 32, %s21
        %p151 = scmp.lt.s32.totalorder %s20, 1
        %s152 = scalar_select %p151, %s20, 1
        %p153 = scmp.lt.s32.totalorder %s150, 31
        %s154 = scalar_select %p153, %s150, 31
        %s155 = smul.addr %s152, 32
        %s156 = sadd.s32 %s154, %s155
        %s157 = smul.addr %s156, 8
        %s158 = scalar_lea.vmem %s0, %s157
        %p159 = pneg %p51
        %p160 = pneg %p48
        %p161 = scmp.lt.s32.totalorder %s20, 1
        %s162 = scalar_select %p161, %s20, 1
        %s163 = smul.addr %s162, 32
        %s164 = smul.addr %s163, 8
        %s165 = scalar_lea.vmem %s1, %s164
        %p166 = pneg %p77
        %p167 = pneg %p74
        %p168 = pneg %p103
        %p169 = pneg %p100
        %s170 = sand.u32 %s90, 1
        %s171 = scalar_lea.sflag [#allocation6], %s170
        %s172 = sand.u32 %s90, 1
        %s173 = smul.addr %s172, 8
        %s174 = scalar_lea.vmem [#allocation5], %s173
        %s175 = smul.u32 32, %s21
        %p176 = scmp.lt.s32.totalorder %s20, 1
        %s177 = scalar_select %p176, %s20, 1
        %p178 = scmp.lt.s32.totalorder %s175, 31
        %s179 = scalar_select %p178, %s175, 31
        %s180 = smul.addr %s177, 32
        %s181 = sadd.s32 %s179, %s180
        %s182 = smul.addr %s181, 8
        %s183 = scalar_lea.vmem %s0, %s182
        %s184 = smul.u32 32, %s21
        %p185 = scmp.lt.s32.totalorder %s20, 1
        %s186 = scalar_select %p185, %s20, 1
        %s187 = smul.addr %s186, 32
        %s188 = smul.addr %s187, 8
        %s189 = scalar_lea.vmem %s1, %s188
        %p190 = scmp.eq.s32.totalorder %s21, 0
        // Predicated region
        $region29: #{tpu_custom_call.1} parent=27 // pred_check
          %p191 = pneg %p190
        $region30: #{tpu_custom_call.1} parent=27 // pred_check_branch
          %193 = sbr.rel (%p191) target = $region32
        $region31: #{tpu_custom_call.1} parent=27 // pred_region
          %v194 = vld [vmem:[%s189] sm:$0xff]
          %v195 = vld [vmem:[%s189 + $0x8] sm:$0xff]
          %v196 = vld [vmem:[%s189 + $0x10] sm:$0xff]
          %v197 = vld [vmem:[%s189 + $0x18] sm:$0xff]
          %v198 = vld [vmem:[%s189 + $0x20] sm:$0xff]
          %v199 = vld [vmem:[%s189 + $0x28] sm:$0xff]
          %v200 = vld [vmem:[%s189 + $0x30] sm:$0xff]
          %v201 = vld [vmem:[%s189 + $0x38] sm:$0xff]
          %v202 = vld [vmem:[%s189 + $0x40] sm:$0xff]
          %v203 = vld [vmem:[%s189 + $0x48] sm:$0xff]
          %v204 = vld [vmem:[%s189 + $0x50] sm:$0xff]
          %v205 = vld [vmem:[%s189 + $0x58] sm:$0xff]
          %v206 = vld [vmem:[%s189 + $0x60] sm:$0xff]
          %v207 = vld [vmem:[%s189 + $0x68] sm:$0xff]
          %v208 = vld [vmem:[%s189 + $0x70] sm:$0xff]
          %v209 = vld [vmem:[%s189 + $0x78] sm:$0xff]
          %v210 = vld [vmem:[%s189 + $0x80] sm:$0xff]
          %v211 = vld [vmem:[%s189 + $0x88] sm:$0xff]
          %v212 = vld [vmem:[%s189 + $0x90] sm:$0xff]
          %v213 = vld [vmem:[%s189 + $0x98] sm:$0xff]
          %v214 = vld [vmem:[%s189 + $0xa0] sm:$0xff]
          %v215 = vld [vmem:[%s189 + $0xa8] sm:$0xff]
          %v216 = vld [vmem:[%s189 + $0xb0] sm:$0xff]
          %v217 = vld [vmem:[%s189 + $0xb8] sm:$0xff]
          %v218 = vld [vmem:[%s189 + $0xc0] sm:$0xff]
          %v219 = vld [vmem:[%s189 + $0xc8] sm:$0xff]
          %v220 = vld [vmem:[%s189 + $0xd0] sm:$0xff]
          %v221 = vld [vmem:[%s189 + $0xd8] sm:$0xff]
          %v222 = vld [vmem:[%s189 + $0xe0] sm:$0xff]
          %v223 = vld [vmem:[%s189 + $0xe8] sm:$0xff]
          %v224 = vld [vmem:[%s189 + $0xf0] sm:$0xff]
          %v225 = vld [vmem:[%s189 + $0xf8] sm:$0xff]
          %vm226 = vcmask 261120
          %v227 = vsel %vm226, %v194, 0.0
          %228 = vadd.xlane.f32.xlu0 %v227
          %v229 = vpop.xlane.xlu0 %228
          %v230 = vsel %vm226, %v195, 0.0
          %231 = vadd.xlane.f32.xlu0 %v230
          %v232 = vpop.xlane.xlu0 %231
          %v233 = vsel %vm226, %v196, 0.0
          %234 = vadd.xlane.f32.xlu0 %v233
          %v235 = vpop.xlane.xlu0 %234
          %v236 = vsel %vm226, %v197, 0.0
          %237 = vadd.xlane.f32.xlu0 %v236
          %v238 = vpop.xlane.xlu0 %237
          %v239 = vsel %vm226, %v198, 0.0
          %240 = vadd.xlane.f32.xlu0 %v239
          %v241 = vpop.xlane.xlu0 %240
          %v242 = vsel %vm226, %v199, 0.0
          %243 = vadd.xlane.f32.xlu0 %v242
          %v244 = vpop.xlane.xlu0 %243
          %v245 = vsel %vm226, %v200, 0.0
          %246 = vadd.xlane.f32.xlu0 %v245
          %v247 = vpop.xlane.xlu0 %246
          %v248 = vsel %vm226, %v201, 0.0
          %249 = vadd.xlane.f32.xlu0 %v248
          %v250 = vpop.xlane.xlu0 %249
          %v251 = vsel %vm226, %v202, 0.0
          %252 = vadd.xlane.f32.xlu0 %v251
          %v253 = vpop.xlane.xlu0 %252
          %v254 = vsel %vm226, %v203, 0.0
          %255 = vadd.xlane.f32.xlu0 %v254
          %v256 = vpop.xlane.xlu0 %255
          %v257 = vsel %vm226, %v204, 0.0
          %258 = vadd.xlane.f32.xlu0 %v257
          %v259 = vpop.xlane.xlu0 %258
          %v260 = vsel %vm226, %v205, 0.0
          %261 = vadd.xlane.f32.xlu0 %v260
          %v262 = vpop.xlane.xlu0 %261
          %v263 = vsel %vm226, %v206, 0.0
          %264 = vadd.xlane.f32.xlu0 %v263
          %v265 = vpop.xlane.xlu0 %264
          %v266 = vsel %vm226, %v207, 0.0
          %267 = vadd.xlane.f32.xlu0 %v266
          %v268 = vpop.xlane.xlu0 %267
          %v269 = vsel %vm226, %v208, 0.0
          %270 = vadd.xlane.f32.xlu0 %v269
          %v271 = vpop.xlane.xlu0 %270
          %v272 = vsel %vm226, %v209, 0.0
          %273 = vadd.xlane.f32.xlu0 %v272
          %v274 = vpop.xlane.xlu0 %273
          %v275 = vsel %vm226, %v210, 0.0
          %276 = vadd.xlane.f32.xlu0 %v275
          %v277 = vpop.xlane.xlu0 %276
          %v278 = vsel %vm226, %v211, 0.0
          %279 = vadd.xlane.f32.xlu0 %v278
          %v280 = vpop.xlane.xlu0 %279
          %v281 = vsel %vm226, %v212, 0.0
          %282 = vadd.xlane.f32.xlu0 %v281
          %v283 = vpop.xlane.xlu0 %282
          %v284 = vsel %vm226, %v213, 0.0
          %285 = vadd.xlane.f32.xlu0 %v284
          %v286 = vpop.xlane.xlu0 %285
          %v287 = vsel %vm226, %v214, 0.0
          %288 = vadd.xlane.f32.xlu0 %v287
          %v289 = vpop.xlane.xlu0 %288
          %v290 = vsel %vm226, %v215, 0.0
          %291 = vadd.xlane.f32.xlu0 %v290
          %v292 = vpop.xlane.xlu0 %291
          %v293 = vsel %vm226, %v216, 0.0
          %294 = vadd.xlane.f32.xlu0 %v293
          %v295 = vpop.xlane.xlu0 %294
          %v296 = vsel %vm226, %v217, 0.0
          %297 = vadd.xlane.f32.xlu0 %v296
          %v298 = vpop.xlane.xlu0 %297
          %v299 = vsel %vm226, %v218, 0.0
          %300 = vadd.xlane.f32.xlu0 %v299
          %v301 = vpop.xlane.xlu0 %300
          %v302 = vsel %vm226, %v219, 0.0
          %303 = vadd.xlane.f32.xlu0 %v302
          %v304 = vpop.xlane.xlu0 %303
          %v305 = vsel %vm226, %v220, 0.0
          %306 = vadd.xlane.f32.xlu0 %v305
          %v307 = vpop.xlane.xlu0 %306
          %v308 = vsel %vm226, %v221, 0.0
          %309 = vadd.xlane.f32.xlu0 %v308
          %v310 = vpop.xlane.xlu0 %309
          %v311 = vsel %vm226, %v222, 0.0
          %312 = vadd.xlane.f32.xlu0 %v311
          %v313 = vpop.xlane.xlu0 %312
          %v314 = vsel %vm226, %v223, 0.0
          %315 = vadd.xlane.f32.xlu0 %v314
          %v316 = vpop.xlane.xlu0 %315
          %v317 = vsel %vm226, %v224, 0.0
          %318 = vadd.xlane.f32.xlu0 %v317
          %v319 = vpop.xlane.xlu0 %318
          %v320 = vsel %vm226, %v225, 0.0
          %321 = vadd.xlane.f32.xlu0 %v320
          %v322 = vpop.xlane.xlu0 %321
          %v323 = vrcp.pop 32.0
          %v324 = vmul.f32 32.0, %v323
          %v325 = vsub.f32 1.0, %v324
          %v326 = vmul.f32 %v323, %v325
          %v327 = vadd.f32 %v323, %v326
          %vm328 = vweird.f32 %v323
          %v329 = vsel %vm328, %v323, %v327
          %v330 = vmul.f32 %v229, %v329
          %v331 = vmul.f32 %v232, %v329
          %v332 = vmul.f32 %v235, %v329
          %v333 = vmul.f32 %v238, %v329
          %v334 = vmul.f32 %v241, %v329
          %v335 = vmul.f32 %v244, %v329
          %v336 = vmul.f32 %v247, %v329
          %v337 = vmul.f32 %v250, %v329
          %v338 = vmul.f32 %v253, %v329
          %v339 = vmul.f32 %v256, %v329
          %v340 = vmul.f32 %v259, %v329
          %v341 = vmul.f32 %v262, %v329
          %v342 = vmul.f32 %v265, %v329
          %v343 = vmul.f32 %v268, %v329
          %v344 = vmul.f32 %v271, %v329
          %v345 = vmul.f32 %v274, %v329
          %v346 = vmul.f32 %v277, %v329
          %v347 = vmul.f32 %v280, %v329
          %v348 = vmul.f32 %v283, %v329
          %v349 = vmul.f32 %v286, %v329
          %v350 = vmul.f32 %v289, %v329
          %v351 = vmul.f32 %v292, %v329
          %v352 = vmul.f32 %v295, %v329
          %v353 = vmul.f32 %v298, %v329
          %v354 = vmul.f32 %v301, %v329
          %v355 = vmul.f32 %v304, %v329
          %v356 = vmul.f32 %v307, %v329
          %v357 = vmul.f32 %v310, %v329
          %v358 = vmul.f32 %v313, %v329
          %v359 = vmul.f32 %v316, %v329
          %v360 = vmul.f32 %v319, %v329
          %v361 = vmul.f32 %v322, %v329
          %v362 = vsub.f32 %v194, %v330
          %v363 = vsub.f32 %v195, %v331
          %v364 = vsub.f32 %v196, %v332
          %v365 = vsub.f32 %v197, %v333
          %v366 = vsub.f32 %v198, %v334
          %v367 = vsub.f32 %v199, %v335
          %v368 = vsub.f32 %v200, %v336
          %v369 = vsub.f32 %v201, %v337
          %v370 = vsub.f32 %v202, %v338
          %v371 = vsub.f32 %v203, %v339
          %v372 = vsub.f32 %v204, %v340
          %v373 = vsub.f32 %v205, %v341
          %v374 = vsub.f32 %v206, %v342
          %v375 = vsub.f32 %v207, %v343
          %v376 = vsub.f32 %v208, %v344
          %v377 = vsub.f32 %v209, %v345
          %v378 = vsub.f32 %v210, %v346
          %v379 = vsub.f32 %v211, %v347
          %v380 = vsub.f32 %v212, %v348
          %v381 = vsub.f32 %v213, %v349
          %v382 = vsub.f32 %v214, %v350
          %v383 = vsub.f32 %v215, %v351
          %v384 = vsub.f32 %v216, %v352
          %v385 = vsub.f32 %v217, %v353
          %v386 = vsub.f32 %v218, %v354
          %v387 = vsub.f32 %v219, %v355
          %v388 = vsub.f32 %v220, %v356
          %v389 = vsub.f32 %v221, %v357
          %v390 = vsub.f32 %v222, %v358
          %v391 = vsub.f32 %v223, %v359
          %v392 = vsub.f32 %v224, %v360
          %v393 = vsub.f32 %v225, %v361
          %v394 = vmul.f32 %v362, %v362
          %v395 = vmul.f32 %v363, %v363
          %v396 = vmul.f32 %v364, %v364
          %v397 = vmul.f32 %v365, %v365
          %v398 = vmul.f32 %v366, %v366
          %v399 = vmul.f32 %v367, %v367
          %v400 = vmul.f32 %v368, %v368
          %v401 = vmul.f32 %v369, %v369
          %v402 = vmul.f32 %v370, %v370
          %v403 = vmul.f32 %v371, %v371
          %v404 = vmul.f32 %v372, %v372
          %v405 = vmul.f32 %v373, %v373
          %v406 = vmul.f32 %v374, %v374
          %v407 = vmul.f32 %v375, %v375
          %v408 = vmul.f32 %v376, %v376
          %v409 = vmul.f32 %v377, %v377
          %v410 = vmul.f32 %v378, %v378
          %v411 = vmul.f32 %v379, %v379
          %v412 = vmul.f32 %v380, %v380
          %v413 = vmul.f32 %v381, %v381
          %v414 = vmul.f32 %v382, %v382
          %v415 = vmul.f32 %v383, %v383
          %v416 = vmul.f32 %v384, %v384
          %v417 = vmul.f32 %v385, %v385
          %v418 = vmul.f32 %v386, %v386
          %v419 = vmul.f32 %v387, %v387
          %v420 = vmul.f32 %v388, %v388
          %v421 = vmul.f32 %v389, %v389
          %v422 = vmul.f32 %v390, %v390
          %v423 = vmul.f32 %v391, %v391
          %v424 = vmul.f32 %v392, %v392
          %v425 = vmul.f32 %v393, %v393
          %v426 = vsel %vm226, %v394, 0.0
          %427 = vadd.xlane.f32.xlu0 %v426
          %v428 = vpop.xlane.xlu0 %427
          %v429 = vsel %vm226, %v395, 0.0
          %430 = vadd.xlane.f32.xlu0 %v429
          %v431 = vpop.xlane.xlu0 %430
          %v432 = vsel %vm226, %v396, 0.0
          %433 = vadd.xlane.f32.xlu0 %v432
          %v434 = vpop.xlane.xlu0 %433
          %v435 = vsel %vm226, %v397, 0.0
          %436 = vadd.xlane.f32.xlu0 %v435
          %v437 = vpop.xlane.xlu0 %436
          %v438 = vsel %vm226, %v398, 0.0
          %439 = vadd.xlane.f32.xlu0 %v438
          %v440 = vpop.xlane.xlu0 %439
          %v441 = vsel %vm226, %v399, 0.0
          %442 = vadd.xlane.f32.xlu0 %v441
          %v443 = vpop.xlane.xlu0 %442
          %v444 = vsel %vm226, %v400, 0.0
          %445 = vadd.xlane.f32.xlu0 %v444
          %v446 = vpop.xlane.xlu0 %445
          %v447 = vsel %vm226, %v401, 0.0
          %448 = vadd.xlane.f32.xlu0 %v447
          %v449 = vpop.xlane.xlu0 %448
          %v450 = vsel %vm226, %v402, 0.0
          %451 = vadd.xlane.f32.xlu0 %v450
          %v452 = vpop.xlane.xlu0 %451
          %v453 = vsel %vm226, %v403, 0.0
          %454 = vadd.xlane.f32.xlu0 %v453
          %v455 = vpop.xlane.xlu0 %454
          %v456 = vsel %vm226, %v404, 0.0
          %457 = vadd.xlane.f32.xlu0 %v456
          %v458 = vpop.xlane.xlu0 %457
          %v459 = vsel %vm226, %v405, 0.0
          %460 = vadd.xlane.f32.xlu0 %v459
          %v461 = vpop.xlane.xlu0 %460
          %v462 = vsel %vm226, %v406, 0.0
          %463 = vadd.xlane.f32.xlu0 %v462
          %v464 = vpop.xlane.xlu0 %463
          %v465 = vsel %vm226, %v407, 0.0
          %466 = vadd.xlane.f32.xlu0 %v465
          %v467 = vpop.xlane.xlu0 %466
          %v468 = vsel %vm226, %v408, 0.0
          %469 = vadd.xlane.f32.xlu0 %v468
          %v470 = vpop.xlane.xlu0 %469
          %v471 = vsel %vm226, %v409, 0.0
          %472 = vadd.xlane.f32.xlu0 %v471
          %v473 = vpop.xlane.xlu0 %472
          %v474 = vsel %vm226, %v410, 0.0
          %475 = vadd.xlane.f32.xlu0 %v474
          %v476 = vpop.xlane.xlu0 %475
          %v477 = vsel %vm226, %v411, 0.0
          %478 = vadd.xlane.f32.xlu0 %v477
          %v479 = vpop.xlane.xlu0 %478
          %v480 = vsel %vm226, %v412, 0.0
          %481 = vadd.xlane.f32.xlu0 %v480
          %v482 = vpop.xlane.xlu0 %481
          %v483 = vsel %vm226, %v413, 0.0
          %484 = vadd.xlane.f32.xlu0 %v483
          %v485 = vpop.xlane.xlu0 %484
          %v486 = vsel %vm226, %v414, 0.0
          %487 = vadd.xlane.f32.xlu0 %v486
          %v488 = vpop.xlane.xlu0 %487
          %v489 = vsel %vm226, %v415, 0.0
          %490 = vadd.xlane.f32.xlu0 %v489
          %v491 = vpop.xlane.xlu0 %490
          %v492 = vsel %vm226, %v416, 0.0
          %493 = vadd.xlane.f32.xlu0 %v492
          %v494 = vpop.xlane.xlu0 %493
          %v495 = vsel %vm226, %v417, 0.0
          %496 = vadd.xlane.f32.xlu0 %v495
          %v497 = vpop.xlane.xlu0 %496
          %v498 = vsel %vm226, %v418, 0.0
          %499 = vadd.xlane.f32.xlu0 %v498
          %v500 = vpop.xlane.xlu0 %499
          %v501 = vsel %vm226, %v419, 0.0
          %502 = vadd.xlane.f32.xlu0 %v501
          %v503 = vpop.xlane.xlu0 %502
          %v504 = vsel %vm226, %v420, 0.0
          %505 = vadd.xlane.f32.xlu0 %v504
          %v506 = vpop.xlane.xlu0 %505
          %v507 = vsel %vm226, %v421, 0.0
          %508 = vadd.xlane.f32.xlu0 %v507
          %v509 = vpop.xlane.xlu0 %508
          %v510 = vsel %vm226, %v422, 0.0
          %511 = vadd.xlane.f32.xlu0 %v510
          %v512 = vpop.xlane.xlu0 %511
          %v513 = vsel %vm226, %v423, 0.0
          %514 = vadd.xlane.f32.xlu0 %v513
          %v515 = vpop.xlane.xlu0 %514
          %v516 = vsel %vm226, %v424, 0.0
          %517 = vadd.xlane.f32.xlu0 %v516
          %v518 = vpop.xlane.xlu0 %517
          %v519 = vsel %vm226, %v425, 0.0
          %520 = vadd.xlane.f32.xlu0 %v519
          %v521 = vpop.xlane.xlu0 %520
          %v522 = vadd.f32 %v428, 1e-12
          %v523 = vadd.f32 %v431, 1e-12
          %v524 = vadd.f32 %v434, 1e-12
          %v525 = vadd.f32 %v437, 1e-12
          %v526 = vadd.f32 %v440, 1e-12
          %v527 = vadd.f32 %v443, 1e-12
          %v528 = vadd.f32 %v446, 1e-12
          %v529 = vadd.f32 %v449, 1e-12
          %v530 = vadd.f32 %v452, 1e-12
          %v531 = vadd.f32 %v455, 1e-12
          %v532 = vadd.f32 %v458, 1e-12
          %v533 = vadd.f32 %v461, 1e-12
          %v534 = vadd.f32 %v464, 1e-12
          %v535 = vadd.f32 %v467, 1e-12
          %v536 = vadd.f32 %v470, 1e-12
          %v537 = vadd.f32 %v473, 1e-12
          %v538 = vadd.f32 %v476, 1e-12
          %v539 = vadd.f32 %v479, 1e-12
          %v540 = vadd.f32 %v482, 1e-12
          %v541 = vadd.f32 %v485, 1e-12
          %v542 = vadd.f32 %v488, 1e-12
          %v543 = vadd.f32 %v491, 1e-12
          %v544 = vadd.f32 %v494, 1e-12
          %v545 = vadd.f32 %v497, 1e-12
          %v546 = vadd.f32 %v500, 1e-12
          %v547 = vadd.f32 %v503, 1e-12
          %v548 = vadd.f32 %v506, 1e-12
          %v549 = vadd.f32 %v509, 1e-12
          %v550 = vadd.f32 %v512, 1e-12
          %v551 = vadd.f32 %v515, 1e-12
          %v552 = vadd.f32 %v518, 1e-12
          %v553 = vadd.f32 %v521, 1e-12
          %v554 = vrsqrt.pop %v522
          %v555 = vmul.f32 %v554, %v522
          %v556 = vmul.f32 %v555, %v554
          %v557 = vmul.f32 0.5, %v556
          %v558 = vsub.f32 1.5, %v557
          %v559 = vmul.f32 %v554, %v558
          %vm560 = vweird.f32 %v522
          %vm561 = vweird.f32 %v554
          %vm562 = vmor %vm560, %vm561
          %v563 = vsel %vm562, %v554, %v559
          %v564 = vrsqrt.pop %v523
          %v565 = vmul.f32 %v564, %v523
          %v566 = vmul.f32 %v565, %v564
          %v567 = vmul.f32 0.5, %v566
          %v568 = vsub.f32 1.5, %v567
          %v569 = vmul.f32 %v564, %v568
          %vm570 = vweird.f32 %v523
          %vm571 = vweird.f32 %v564
          %vm572 = vmor %vm570, %vm571
          %v573 = vsel %vm572, %v564, %v569
          %v574 = vrsqrt.pop %v524
          %v575 = vmul.f32 %v574, %v524
          %v576 = vmul.f32 %v575, %v574
          %v577 = vmul.f32 0.5, %v576
          %v578 = vsub.f32 1.5, %v577
          %v579 = vmul.f32 %v574, %v578
          %vm580 = vweird.f32 %v524
          %vm581 = vweird.f32 %v574
          %vm582 = vmor %vm580, %vm581
          %v583 = vsel %vm582, %v574, %v579
          %v584 = vrsqrt.pop %v525
          %v585 = vmul.f32 %v584, %v525
          %v586 = vmul.f32 %v585, %v584
          %v587 = vmul.f32 0.5, %v586
          %v588 = vsub.f32 1.5, %v587
          %v589 = vmul.f32 %v584, %v588
          %vm590 = vweird.f32 %v525
          %vm591 = vweird.f32 %v584
          %vm592 = vmor %vm590, %vm591
          %v593 = vsel %vm592, %v584, %v589
          %v594 = vrsqrt.pop %v526
          %v595 = vmul.f32 %v594, %v526
          %v596 = vmul.f32 %v595, %v594
          %v597 = vmul.f32 0.5, %v596
          %v598 = vsub.f32 1.5, %v597
          %v599 = vmul.f32 %v594, %v598
          %vm600 = vweird.f32 %v526
          %vm601 = vweird.f32 %v594
          %vm602 = vmor %vm600, %vm601
          %v603 = vsel %vm602, %v594, %v599
          %v604 = vrsqrt.pop %v527
          %v605 = vmul.f32 %v604, %v527
          %v606 = vmul.f32 %v605, %v604
          %v607 = vmul.f32 0.5, %v606
          %v608 = vsub.f32 1.5, %v607
          %v609 = vmul.f32 %v604, %v608
          %vm610 = vweird.f32 %v527
          %vm611 = vweird.f32 %v604
          %vm612 = vmor %vm610, %vm611
          %v613 = vsel %vm612, %v604, %v609
          %v614 = vrsqrt.pop %v528
          %v615 = vmul.f32 %v614, %v528
          %v616 = vmul.f32 %v615, %v614
          %v617 = vmul.f32 0.5, %v616
          %v618 = vsub.f32 1.5, %v617
          %v619 = vmul.f32 %v614, %v618
          %vm620 = vweird.f32 %v528
          %vm621 = vweird.f32 %v614
          %vm622 = vmor %vm620, %vm621
          %v623 = vsel %vm622, %v614, %v619
          %v624 = vrsqrt.pop %v529
          %v625 = vmul.f32 %v624, %v529
          %v626 = vmul.f32 %v625, %v624
          %v627 = vmul.f32 0.5, %v626
          %v628 = vsub.f32 1.5, %v627
          %v629 = vmul.f32 %v624, %v628
          %vm630 = vweird.f32 %v529
          %vm631 = vweird.f32 %v624
          %vm632 = vmor %vm630, %vm631
          %v633 = vsel %vm632, %v624, %v629
          %v634 = vrsqrt.pop %v530
          %v635 = vmul.f32 %v634, %v530
          %v636 = vmul.f32 %v635, %v634
          %v637 = vmul.f32 0.5, %v636
          %v638 = vsub.f32 1.5, %v637
          %v639 = vmul.f32 %v634, %v638
          %vm640 = vweird.f32 %v530
          %vm641 = vweird.f32 %v634
          %vm642 = vmor %vm640, %vm641
          %v643 = vsel %vm642, %v634, %v639
          %v644 = vrsqrt.pop %v531
          %v645 = vmul.f32 %v644, %v531
          %v646 = vmul.f32 %v645, %v644
          %v647 = vmul.f32 0.5, %v646
          %v648 = vsub.f32 1.5, %v647
          %v649 = vmul.f32 %v644, %v648
          %vm650 = vweird.f32 %v531
          %vm651 = vweird.f32 %v644
          %vm652 = vmor %vm650, %vm651
          %v653 = vsel %vm652, %v644, %v649
          %v654 = vrsqrt.pop %v532
          %v655 = vmul.f32 %v654, %v532
          %v656 = vmul.f32 %v655, %v654
          %v657 = vmul.f32 0.5, %v656
          %v658 = vsub.f32 1.5, %v657
          %v659 = vmul.f32 %v654, %v658
          %vm660 = vweird.f32 %v532
          %vm661 = vweird.f32 %v654
          %vm662 = vmor %vm660, %vm661
          %v663 = vsel %vm662, %v654, %v659
          %v664 = vrsqrt.pop %v533
          %v665 = vmul.f32 %v664, %v533
          %v666 = vmul.f32 %v665, %v664
          %v667 = vmul.f32 0.5, %v666
          %v668 = vsub.f32 1.5, %v667
          %v669 = vmul.f32 %v664, %v668
          %vm670 = vweird.f32 %v533
          %vm671 = vweird.f32 %v664
          %vm672 = vmor %vm670, %vm671
          %v673 = vsel %vm672, %v664, %v669
          %v674 = vrsqrt.pop %v534
          %v675 = vmul.f32 %v674, %v534
          %v676 = vmul.f32 %v675, %v674
          %v677 = vmul.f32 0.5, %v676
          %v678 = vsub.f32 1.5, %v677
          %v679 = vmul.f32 %v674, %v678
          %vm680 = vweird.f32 %v534
          %vm681 = vweird.f32 %v674
          %vm682 = vmor %vm680, %vm681
          %v683 = vsel %vm682, %v674, %v679
          %v684 = vrsqrt.pop %v535
          %v685 = vmul.f32 %v684, %v535
          %v686 = vmul.f32 %v685, %v684
          %v687 = vmul.f32 0.5, %v686
          %v688 = vsub.f32 1.5, %v687
          %v689 = vmul.f32 %v684, %v688
          %vm690 = vweird.f32 %v535
          %vm691 = vweird.f32 %v684
          %vm692 = vmor %vm690, %vm691
          %v693 = vsel %vm692, %v684, %v689
          %v694 = vrsqrt.pop %v536
          %v695 = vmul.f32 %v694, %v536
          %v696 = vmul.f32 %v695, %v694
          %v697 = vmul.f32 0.5, %v696
          %v698 = vsub.f32 1.5, %v697
          %v699 = vmul.f32 %v694, %v698
          %vm700 = vweird.f32 %v536
          %vm701 = vweird.f32 %v694
          %vm702 = vmor %vm700, %vm701
          %v703 = vsel %vm702, %v694, %v699
          %v704 = vrsqrt.pop %v537
          %v705 = vmul.f32 %v704, %v537
          %v706 = vmul.f32 %v705, %v704
          %v707 = vmul.f32 0.5, %v706
          %v708 = vsub.f32 1.5, %v707
          %v709 = vmul.f32 %v704, %v708
          %vm710 = vweird.f32 %v537
          %vm711 = vweird.f32 %v704
          %vm712 = vmor %vm710, %vm711
          %v713 = vsel %vm712, %v704, %v709
          %v714 = vrsqrt.pop %v538
          %v715 = vmul.f32 %v714, %v538
          %v716 = vmul.f32 %v715, %v714
          %v717 = vmul.f32 0.5, %v716
          %v718 = vsub.f32 1.5, %v717
          %v719 = vmul.f32 %v714, %v718
          %vm720 = vweird.f32 %v538
          %vm721 = vweird.f32 %v714
          %vm722 = vmor %vm720, %vm721
          %v723 = vsel %vm722, %v714, %v719
          %v724 = vrsqrt.pop %v539
          %v725 = vmul.f32 %v724, %v539
          %v726 = vmul.f32 %v725, %v724
          %v727 = vmul.f32 0.5, %v726
          %v728 = vsub.f32 1.5, %v727
          %v729 = vmul.f32 %v724, %v728
          %vm730 = vweird.f32 %v539
          %vm731 = vweird.f32 %v724
          %vm732 = vmor %vm730, %vm731
          %v733 = vsel %vm732, %v724, %v729
          %v734 = vrsqrt.pop %v540
          %v735 = vmul.f32 %v734, %v540
          %v736 = vmul.f32 %v735, %v734
          %v737 = vmul.f32 0.5, %v736
          %v738 = vsub.f32 1.5, %v737
          %v739 = vmul.f32 %v734, %v738
          %vm740 = vweird.f32 %v540
          %vm741 = vweird.f32 %v734
          %vm742 = vmor %vm740, %vm741
          %v743 = vsel %vm742, %v734, %v739
          %v744 = vrsqrt.pop %v541
          %v745 = vmul.f32 %v744, %v541
          %v746 = vmul.f32 %v745, %v744
          %v747 = vmul.f32 0.5, %v746
          %v748 = vsub.f32 1.5, %v747
          %v749 = vmul.f32 %v744, %v748
          %vm750 = vweird.f32 %v541
          %vm751 = vweird.f32 %v744
          %vm752 = vmor %vm750, %vm751
          %v753 = vsel %vm752, %v744, %v749
          %v754 = vrsqrt.pop %v542
          %v755 = vmul.f32 %v754, %v542
          %v756 = vmul.f32 %v755, %v754
          %v757 = vmul.f32 0.5, %v756
          %v758 = vsub.f32 1.5, %v757
          %v759 = vmul.f32 %v754, %v758
          %vm760 = vweird.f32 %v542
          %vm761 = vweird.f32 %v754
          %vm762 = vmor %vm760, %vm761
          %v763 = vsel %vm762, %v754, %v759
          %v764 = vrsqrt.pop %v543
          %v765 = vmul.f32 %v764, %v543
          %v766 = vmul.f32 %v765, %v764
          %v767 = vmul.f32 0.5, %v766
          %v768 = vsub.f32 1.5, %v767
          %v769 = vmul.f32 %v764, %v768
          %vm770 = vweird.f32 %v543
          %vm771 = vweird.f32 %v764
          %vm772 = vmor %vm770, %vm771
          %v773 = vsel %vm772, %v764, %v769
          %v774 = vrsqrt.pop %v544
          %v775 = vmul.f32 %v774, %v544
          %v776 = vmul.f32 %v775, %v774
          %v777 = vmul.f32 0.5, %v776
          %v778 = vsub.f32 1.5, %v777
          %v779 = vmul.f32 %v774, %v778
          %vm780 = vweird.f32 %v544
          %vm781 = vweird.f32 %v774
          %vm782 = vmor %vm780, %vm781
          %v783 = vsel %vm782, %v774, %v779
          %v784 = vrsqrt.pop %v545
          %v785 = vmul.f32 %v784, %v545
          %v786 = vmul.f32 %v785, %v784
          %v787 = vmul.f32 0.5, %v786
          %v788 = vsub.f32 1.5, %v787
          %v789 = vmul.f32 %v784, %v788
          %vm790 = vweird.f32 %v545
          %vm791 = vweird.f32 %v784
          %vm792 = vmor %vm790, %vm791
          %v793 = vsel %vm792, %v784, %v789
          %v794 = vrsqrt.pop %v546
          %v795 = vmul.f32 %v794, %v546
          %v796 = vmul.f32 %v795, %v794
          %v797 = vmul.f32 0.5, %v796
          %v798 = vsub.f32 1.5, %v797
          %v799 = vmul.f32 %v794, %v798
          %vm800 = vweird.f32 %v546
          %vm801 = vweird.f32 %v794
          %vm802 = vmor %vm800, %vm801
          %v803 = vsel %vm802, %v794, %v799
          %v804 = vrsqrt.pop %v547
          %v805 = vmul.f32 %v804, %v547
          %v806 = vmul.f32 %v805, %v804
          %v807 = vmul.f32 0.5, %v806
          %v808 = vsub.f32 1.5, %v807
          %v809 = vmul.f32 %v804, %v808
          %vm810 = vweird.f32 %v547
          %vm811 = vweird.f32 %v804
          %vm812 = vmor %vm810, %vm811
          %v813 = vsel %vm812, %v804, %v809
          %v814 = vrsqrt.pop %v548
          %v815 = vmul.f32 %v814, %v548
          %v816 = vmul.f32 %v815, %v814
          %v817 = vmul.f32 0.5, %v816
          %v818 = vsub.f32 1.5, %v817
          %v819 = vmul.f32 %v814, %v818
          %vm820 = vweird.f32 %v548
          %vm821 = vweird.f32 %v814
          %vm822 = vmor %vm820, %vm821
          %v823 = vsel %vm822, %v814, %v819
          %v824 = vrsqrt.pop %v549
          %v825 = vmul.f32 %v824, %v549
          %v826 = vmul.f32 %v825, %v824
          %v827 = vmul.f32 0.5, %v826
          %v828 = vsub.f32 1.5, %v827
          %v829 = vmul.f32 %v824, %v828
          %vm830 = vweird.f32 %v549
          %vm831 = vweird.f32 %v824
          %vm832 = vmor %vm830, %vm831
          %v833 = vsel %vm832, %v824, %v829
          %v834 = vrsqrt.pop %v550
          %v835 = vmul.f32 %v834, %v550
          %v836 = vmul.f32 %v835, %v834
          %v837 = vmul.f32 0.5, %v836
          %v838 = vsub.f32 1.5, %v837
          %v839 = vmul.f32 %v834, %v838
          %vm840 = vweird.f32 %v550
          %vm841 = vweird.f32 %v834
          %vm842 = vmor %vm840, %vm841
          %v843 = vsel %vm842, %v834, %v839
          %v844 = vrsqrt.pop %v551
          %v845 = vmul.f32 %v844, %v551
          %v846 = vmul.f32 %v845, %v844
          %v847 = vmul.f32 0.5, %v846
          %v848 = vsub.f32 1.5, %v847
          %v849 = vmul.f32 %v844, %v848
          %vm850 = vweird.f32 %v551
          %vm851 = vweird.f32 %v844
          %vm852 = vmor %vm850, %vm851
          %v853 = vsel %vm852, %v844, %v849
          %v854 = vrsqrt.pop %v552
          %v855 = vmul.f32 %v854, %v552
          %v856 = vmul.f32 %v855, %v854
          %v857 = vmul.f32 0.5, %v856
          %v858 = vsub.f32 1.5, %v857
          %v859 = vmul.f32 %v854, %v858
          %vm860 = vweird.f32 %v552
          %vm861 = vweird.f32 %v854
          %vm862 = vmor %vm860, %vm861
          %v863 = vsel %vm862, %v854, %v859
          %v864 = vrsqrt.pop %v553
          %v865 = vmul.f32 %v864, %v553
          %v866 = vmul.f32 %v865, %v864
          %v867 = vmul.f32 0.5, %v866
          %v868 = vsub.f32 1.5, %v867
          %v869 = vmul.f32 %v864, %v868
          %vm870 = vweird.f32 %v553
          %vm871 = vweird.f32 %v864
          %vm872 = vmor %vm870, %vm871
          %v873 = vsel %vm872, %v864, %v869
          %v874 = vmul.f32 %v362, %v563
          %v875 = vmul.f32 %v363, %v573
          %v876 = vmul.f32 %v364, %v583
          %v877 = vmul.f32 %v365, %v593
          %v878 = vmul.f32 %v366, %v603
          %v879 = vmul.f32 %v367, %v613
          %v880 = vmul.f32 %v368, %v623
          %v881 = vmul.f32 %v369, %v633
          %v882 = vmul.f32 %v370, %v643
          %v883 = vmul.f32 %v371, %v653
          %v884 = vmul.f32 %v372, %v663
          %v885 = vmul.f32 %v373, %v673
          %v886 = vmul.f32 %v374, %v683
          %v887 = vmul.f32 %v375, %v693
          %v888 = vmul.f32 %v376, %v703
          %v889 = vmul.f32 %v377, %v713
          %v890 = vmul.f32 %v378, %v723
          %v891 = vmul.f32 %v379, %v733
          %v892 = vmul.f32 %v380, %v743
          %v893 = vmul.f32 %v381, %v753
          %v894 = vmul.f32 %v382, %v763
          %v895 = vmul.f32 %v383, %v773
          %v896 = vmul.f32 %v384, %v783
          %v897 = vmul.f32 %v385, %v793
          %v898 = vmul.f32 %v386, %v803
          %v899 = vmul.f32 %v387, %v813
          %v900 = vmul.f32 %v388, %v823
          %v901 = vmul.f32 %v389, %v833
          %v902 = vmul.f32 %v390, %v843
          %v903 = vmul.f32 %v391, %v853
          %v904 = vmul.f32 %v392, %v863
          %v905 = vmul.f32 %v393, %v873
          %v906 = vpack.c.bf16 %v874, %v874
          %v907 = vpack.c.bf16 %v875, %v875
          %v908 = vpack.c.bf16 %v876, %v876
          %v909 = vpack.c.bf16 %v877, %v877
          %v910 = vpack.c.bf16 %v878, %v878
          %v911 = vpack.c.bf16 %v879, %v879
          %v912 = vpack.c.bf16 %v880, %v880
          %v913 = vpack.c.bf16 %v881, %v881
          %v914 = vpack.c.bf16 %v882, %v882
          %v915 = vpack.c.bf16 %v883, %v883
          %v916 = vpack.c.bf16 %v884, %v884
          %v917 = vpack.c.bf16 %v885, %v885
          %v918 = vpack.c.bf16 %v886, %v886
          %v919 = vpack.c.bf16 %v887, %v887
          %v920 = vpack.c.bf16 %v888, %v888
          %v921 = vpack.c.bf16 %v889, %v889
          %v922 = vpack.c.bf16 %v890, %v890
          %v923 = vpack.c.bf16 %v891, %v891
          %v924 = vpack.c.bf16 %v892, %v892
          %v925 = vpack.c.bf16 %v893, %v893
          %v926 = vpack.c.bf16 %v894, %v894
          %v927 = vpack.c.bf16 %v895, %v895
          %v928 = vpack.c.bf16 %v896, %v896
          %v929 = vpack.c.bf16 %v897, %v897
          %v930 = vpack.c.bf16 %v898, %v898
          %v931 = vpack.c.bf16 %v899, %v899
          %v932 = vpack.c.bf16 %v900, %v900
          %v933 = vpack.c.bf16 %v901, %v901
          %v934 = vpack.c.bf16 %v902, %v902
          %v935 = vpack.c.bf16 %v903, %v903
          %v936 = vpack.c.bf16 %v904, %v904
          %v937 = vpack.c.bf16 %v905, %v905
          %vm938 = vcmask 257024
          %939 = vst.msk [vmem:[#allocation2] sm:$0xf] %vm938, %v906
          %940 = vst.msk [vmem:[#allocation2 + $0x4] sm:$0xf] %vm938, %v907
          %941 = vst.msk [vmem:[#allocation2 + $0x8] sm:$0xf] %vm938, %v908
          %942 = vst.msk [vmem:[#allocation2 + $0xc] sm:$0xf] %vm938, %v909
          %943 = vst.msk [vmem:[#allocation2 + $0x10] sm:$0xf] %vm938, %v910
          %944 = vst.msk [vmem:[#allocation2 + $0x14] sm:$0xf] %vm938, %v911
          %945 = vst.msk [vmem:[#allocation2 + $0x18] sm:$0xf] %vm938, %v912
          %946 = vst.msk [vmem:[#allocation2 + $0x1c] sm:$0xf] %vm938, %v913
          %947 = vst.msk [vmem:[#allocation2 + $0x20] sm:$0xf] %vm938, %v914
          %948 = vst.msk [vmem:[#allocation2 + $0x24] sm:$0xf] %vm938, %v915
          %949 = vst.msk [vmem:[#allocation2 + $0x28] sm:$0xf] %vm938, %v916
          %950 = vst.msk [vmem:[#allocation2 + $0x2c] sm:$0xf] %vm938, %v917
          %951 = vst.msk [vmem:[#allocation2 + $0x30] sm:$0xf] %vm938, %v918
          %952 = vst.msk [vmem:[#allocation2 + $0x34] sm:$0xf] %vm938, %v919
          %953 = vst.msk [vmem:[#allocation2 + $0x38] sm:$0xf] %vm938, %v920
          %954 = vst.msk [vmem:[#allocation2 + $0x3c] sm:$0xf] %vm938, %v921
          %955 = vst.msk [vmem:[#allocation2 + $0x40] sm:$0xf] %vm938, %v922
          %956 = vst.msk [vmem:[#allocation2 + $0x44] sm:$0xf] %vm938, %v923
          %957 = vst.msk [vmem:[#allocation2 + $0x48] sm:$0xf] %vm938, %v924
          %958 = vst.msk [vmem:[#allocation2 + $0x4c] sm:$0xf] %vm938, %v925
          %959 = vst.msk [vmem:[#allocation2 + $0x50] sm:$0xf] %vm938, %v926
          %960 = vst.msk [vmem:[#allocation2 + $0x54] sm:$0xf] %vm938, %v927
          %961 = vst.msk [vmem:[#allocation2 + $0x58] sm:$0xf] %vm938, %v928
          %962 = vst.msk [vmem:[#allocation2 + $0x5c] sm:$0xf] %vm938, %v929
          %963 = vst.msk [vmem:[#allocation2 + $0x60] sm:$0xf] %vm938, %v930
          %964 = vst.msk [vmem:[#allocation2 + $0x64] sm:$0xf] %vm938, %v931
          %965 = vst.msk [vmem:[#allocation2 + $0x68] sm:$0xf] %vm938, %v932
          %966 = vst.msk [vmem:[#allocation2 + $0x6c] sm:$0xf] %vm938, %v933
          %967 = vst.msk [vmem:[#allocation2 + $0x70] sm:$0xf] %vm938, %v934
          %968 = vst.msk [vmem:[#allocation2 + $0x74] sm:$0xf] %vm938, %v935
          %969 = vst.msk [vmem:[#allocation2 + $0x78] sm:$0xf] %vm938, %v936
          %970 = vst.msk [vmem:[#allocation2 + $0x7c] sm:$0xf] %vm938, %v937
          %vm971 = vcmask 7168
          %972 = vst.msk [vmem:[#allocation3] sm:$0xff] %vm971, %v330
          %973 = vst.msk [vmem:[#allocation3 + $0x8] sm:$0xff] %vm971, %v331
          %974 = vst.msk [vmem:[#allocation3 + $0x10] sm:$0xff] %vm971, %v332
          %975 = vst.msk [vmem:[#allocation3 + $0x18] sm:$0xff] %vm971, %v333
          %976 = vst.msk [vmem:[#allocation3 + $0x20] sm:$0xff] %vm971, %v334
          %977 = vst.msk [vmem:[#allocation3 + $0x28] sm:$0xff] %vm971, %v335
          %978 = vst.msk [vmem:[#allocation3 + $0x30] sm:$0xff] %vm971, %v336
          %979 = vst.msk [vmem:[#allocation3 + $0x38] sm:$0xff] %vm971, %v337
          %980 = vst.msk [vmem:[#allocation3 + $0x40] sm:$0xff] %vm971, %v338
          %981 = vst.msk [vmem:[#allocation3 + $0x48] sm:$0xff] %vm971, %v339
          %982 = vst.msk [vmem:[#allocation3 + $0x50] sm:$0xff] %vm971, %v340
          %983 = vst.msk [vmem:[#allocation3 + $0x58] sm:$0xff] %vm971, %v341
          %984 = vst.msk [vmem:[#allocation3 + $0x60] sm:$0xff] %vm971, %v342
          %985 = vst.msk [vmem:[#allocation3 + $0x68] sm:$0xff] %vm971, %v343
          %986 = vst.msk [vmem:[#allocation3 + $0x70] sm:$0xff] %vm971, %v344
          %987 = vst.msk [vmem:[#allocation3 + $0x78] sm:$0xff] %vm971, %v345
          %988 = vst.msk [vmem:[#allocation3 + $0x80] sm:$0xff] %vm971, %v346
          %989 = vst.msk [vmem:[#allocation3 + $0x88] sm:$0xff] %vm971, %v347
          %990 = vst.msk [vmem:[#allocation3 + $0x90] sm:$0xff] %vm971, %v348
          %991 = vst.msk [vmem:[#allocation3 + $0x98] sm:$0xff] %vm971, %v349
          %992 = vst.msk [vmem:[#allocation3 + $0xa0] sm:$0xff] %vm971, %v350
          %993 = vst.msk [vmem:[#allocation3 + $0xa8] sm:$0xff] %vm971, %v351
          %994 = vst.msk [vmem:[#allocation3 + $0xb0] sm:$0xff] %vm971, %v352
          %995 = vst.msk [vmem:[#allocation3 + $0xb8] sm:$0xff] %vm971, %v353
          %996 = vst.msk [vmem:[#allocation3 + $0xc0] sm:$0xff] %vm971, %v354
          %997 = vst.msk [vmem:[#allocation3 + $0xc8] sm:$0xff] %vm971, %v355
          %998 = vst.msk [vmem:[#allocation3 + $0xd0] sm:$0xff] %vm971, %v356
          %999 = vst.msk [vmem:[#allocation3 + $0xd8] sm:$0xff] %vm971, %v357
          %1000 = vst.msk [vmem:[#allocation3 + $0xe0] sm:$0xff] %vm971, %v358
          %1001 = vst.msk [vmem:[#allocation3 + $0xe8] sm:$0xff] %vm971, %v359
          %1002 = vst.msk [vmem:[#allocation3 + $0xf0] sm:$0xff] %vm971, %v360
          %1003 = vst.msk [vmem:[#allocation3 + $0xf8] sm:$0xff] %vm971, %v361
          %1004 = vst.msk [vmem:[#allocation4] sm:$0xff] %vm971, 0.0
          %1005 = vst.msk [vmem:[#allocation4 + $0x8] sm:$0xff] %vm971, 0.0
          %1006 = vst.msk [vmem:[#allocation4 + $0x10] sm:$0xff] %vm971, 0.0
          %1007 = vst.msk [vmem:[#allocation4 + $0x18] sm:$0xff] %vm971, 0.0
          %1008 = vst.msk [vmem:[#allocation4 + $0x20] sm:$0xff] %vm971, 0.0
          %1009 = vst.msk [vmem:[#allocation4 + $0x28] sm:$0xff] %vm971, 0.0
          %1010 = vst.msk [vmem:[#allocation4 + $0x30] sm:$0xff] %vm971, 0.0
          %1011 = vst.msk [vmem:[#allocation4 + $0x38] sm:$0xff] %vm971, 0.0
          %1012 = vst.msk [vmem:[#allocation4 + $0x40] sm:$0xff] %vm971, 0.0
          %1013 = vst.msk [vmem:[#allocation4 + $0x48] sm:$0xff] %vm971, 0.0
          %1014 = vst.msk [vmem:[#allocation4 + $0x50] sm:$0xff] %vm971, 0.0
          %1015 = vst.msk [vmem:[#allocation4 + $0x58] sm:$0xff] %vm971, 0.0
          %1016 = vst.msk [vmem:[#allocation4 + $0x60] sm:$0xff] %vm971, 0.0
          %1017 = vst.msk [vmem:[#allocation4 + $0x68] sm:$0xff] %vm971, 0.0
          %1018 = vst.msk [vmem:[#allocation4 + $0x70] sm:$0xff] %vm971, 0.0
          %1019 = vst.msk [vmem:[#allocation4 + $0x78] sm:$0xff] %vm971, 0.0
          %1020 = vst.msk [vmem:[#allocation4 + $0x80] sm:$0xff] %vm971, 0.0
          %1021 = vst.msk [vmem:[#allocation4 + $0x88] sm:$0xff] %vm971, 0.0
          %1022 = vst.msk [vmem:[#allocation4 + $0x90] sm:$0xff] %vm971, 0.0
          %1023 = vst.msk [vmem:[#allocation4 + $0x98] sm:$0xff] %vm971, 0.0
          %1024 = vst.msk [vmem:[#allocation4 + $0xa0] sm:$0xff] %vm971, 0.0
          %1025 = vst.msk [vmem:[#allocation4 + $0xa8] sm:$0xff] %vm971, 0.0
          %1026 = vst.msk [vmem:[#allocation4 + $0xb0] sm:$0xff] %vm971, 0.0
          %1027 = vst.msk [vmem:[#allocation4 + $0xb8] sm:$0xff] %vm971, 0.0
          %1028 = vst.msk [vmem:[#allocation4 + $0xc0] sm:$0xff] %vm971, 0.0
          %1029 = vst.msk [vmem:[#allocation4 + $0xc8] sm:$0xff] %vm971, 0.0
          %1030 = vst.msk [vmem:[#allocation4 + $0xd0] sm:$0xff] %vm971, 0.0
          %1031 = vst.msk [vmem:[#allocation4 + $0xd8] sm:$0xff] %vm971, 0.0
          %1032 = vst.msk [vmem:[#allocation4 + $0xe0] sm:$0xff] %vm971, 0.0
          %1033 = vst.msk [vmem:[#allocation4 + $0xe8] sm:$0xff] %vm971, 0.0
          %1034 = vst.msk [vmem:[#allocation4 + $0xf0] sm:$0xff] %vm971, 0.0
          %1035 = vst.msk [vmem:[#allocation4 + $0xf8] sm:$0xff] %vm971, 0.0
        $region32: #{tpu_custom_call.1} parent=27 // pred_fallthru
          _
        %s1036 = smul.u32 %s21, 256
        %s1037 = scalar_lea.vmem [#allocation3], %s1036
        %v1038 = vld [vmem:[%s1037] sm:$0xff]
        %v1039 = vld [vmem:[%s1037 + $0x8] sm:$0xff]
        %v1040 = vld [vmem:[%s1037 + $0x10] sm:$0xff]
        %v1041 = vld [vmem:[%s1037 + $0x18] sm:$0xff]
        %v1042 = vld [vmem:[%s1037 + $0x20] sm:$0xff]
        %v1043 = vld [vmem:[%s1037 + $0x28] sm:$0xff]
        %v1044 = vld [vmem:[%s1037 + $0x30] sm:$0xff]
        %v1045 = vld [vmem:[%s1037 + $0x38] sm:$0xff]
        %v1046 = vld [vmem:[%s1037 + $0x40] sm:$0xff]
        %v1047 = vld [vmem:[%s1037 + $0x48] sm:$0xff]
        %v1048 = vld [vmem:[%s1037 + $0x50] sm:$0xff]
        %v1049 = vld [vmem:[%s1037 + $0x58] sm:$0xff]
        %v1050 = vld [vmem:[%s1037 + $0x60] sm:$0xff]
        %v1051 = vld [vmem:[%s1037 + $0x68] sm:$0xff]
        %v1052 = vld [vmem:[%s1037 + $0x70] sm:$0xff]
        %v1053 = vld [vmem:[%s1037 + $0x78] sm:$0xff]
        %v1054 = vld [vmem:[%s1037 + $0x80] sm:$0xff]
        %v1055 = vld [vmem:[%s1037 + $0x88] sm:$0xff]
        %v1056 = vld [vmem:[%s1037 + $0x90] sm:$0xff]
        %v1057 = vld [vmem:[%s1037 + $0x98] sm:$0xff]
        %v1058 = vld [vmem:[%s1037 + $0xa0] sm:$0xff]
        %v1059 = vld [vmem:[%s1037 + $0xa8] sm:$0xff]
        %v1060 = vld [vmem:[%s1037 + $0xb0] sm:$0xff]
        %v1061 = vld [vmem:[%s1037 + $0xb8] sm:$0xff]
        %v1062 = vld [vmem:[%s1037 + $0xc0] sm:$0xff]
        %v1063 = vld [vmem:[%s1037 + $0xc8] sm:$0xff]
        %v1064 = vld [vmem:[%s1037 + $0xd0] sm:$0xff]
        %v1065 = vld [vmem:[%s1037 + $0xd8] sm:$0xff]
        %v1066 = vld [vmem:[%s1037 + $0xe0] sm:$0xff]
        %v1067 = vld [vmem:[%s1037 + $0xe8] sm:$0xff]
        %v1068 = vld [vmem:[%s1037 + $0xf0] sm:$0xff]
        %v1069 = vld [vmem:[%s1037 + $0xf8] sm:$0xff]
        %v1070 = vld [vmem:[%s183] sm:$0xff]
        %v1071 = vld [vmem:[%s183 + $0x8] sm:$0xff]
        %v1072 = vld [vmem:[%s183 + $0x10] sm:$0xff]
        %v1073 = vld [vmem:[%s183 + $0x18] sm:$0xff]
        %v1074 = vld [vmem:[%s183 + $0x20] sm:$0xff]
        %v1075 = vld [vmem:[%s183 + $0x28] sm:$0xff]
        %v1076 = vld [vmem:[%s183 + $0x30] sm:$0xff]
        %v1077 = vld [vmem:[%s183 + $0x38] sm:$0xff]
        %v1078 = vld [vmem:[%s183 + $0x40] sm:$0xff]
        %v1079 = vld [vmem:[%s183 + $0x48] sm:$0xff]
        %v1080 = vld [vmem:[%s183 + $0x50] sm:$0xff]
        %v1081 = vld [vmem:[%s183 + $0x58] sm:$0xff]
        %v1082 = vld [vmem:[%s183 + $0x60] sm:$0xff]
        %v1083 = vld [vmem:[%s183 + $0x68] sm:$0xff]
        %v1084 = vld [vmem:[%s183 + $0x70] sm:$0xff]
        %v1085 = vld [vmem:[%s183 + $0x78] sm:$0xff]
        %v1086 = vld [vmem:[%s183 + $0x80] sm:$0xff]
        %v1087 = vld [vmem:[%s183 + $0x88] sm:$0xff]
        %v1088 = vld [vmem:[%s183 + $0x90] sm:$0xff]
        %v1089 = vld [vmem:[%s183 + $0x98] sm:$0xff]
        %v1090 = vld [vmem:[%s183 + $0xa0] sm:$0xff]
        %v1091 = vld [vmem:[%s183 + $0xa8] sm:$0xff]
        %v1092 = vld [vmem:[%s183 + $0xb0] sm:$0xff]
        %v1093 = vld [vmem:[%s183 + $0xb8] sm:$0xff]
        %v1094 = vld [vmem:[%s183 + $0xc0] sm:$0xff]
        %v1095 = vld [vmem:[%s183 + $0xc8] sm:$0xff]
        %v1096 = vld [vmem:[%s183 + $0xd0] sm:$0xff]
        %v1097 = vld [vmem:[%s183 + $0xd8] sm:$0xff]
        %v1098 = vld [vmem:[%s183 + $0xe0] sm:$0xff]
        %v1099 = vld [vmem:[%s183 + $0xe8] sm:$0xff]
        %v1100 = vld [vmem:[%s183 + $0xf0] sm:$0xff]
        %v1101 = vld [vmem:[%s183 + $0xf8] sm:$0xff]
        %1103 = vset.pattern.permute.xlu0 0
        %1104 = vperm.xlu0 %1103, %v1038
        %v1105 = vpop.permute.xlu0 %1104
        %1108 = vset.pattern.permute.xlu0 0
        %1109 = vperm.xlu0 %1108, %v1039
        %v1110 = vpop.permute.xlu0 %1109
        %1113 = vset.pattern.permute.xlu0 0
        %1114 = vperm.xlu0 %1113, %v1040
        %v1115 = vpop.permute.xlu0 %1114
        %1118 = vset.pattern.permute.xlu0 0
        %1119 = vperm.xlu0 %1118, %v1041
        %v1120 = vpop.permute.xlu0 %1119
        %1123 = vset.pattern.permute.xlu0 0
        %1124 = vperm.xlu0 %1123, %v1042
        %v1125 = vpop.permute.xlu0 %1124
        %1128 = vset.pattern.permute.xlu0 0
        %1129 = vperm.xlu0 %1128, %v1043
        %v1130 = vpop.permute.xlu0 %1129
        %1133 = vset.pattern.permute.xlu0 0
        %1134 = vperm.xlu0 %1133, %v1044
        %v1135 = vpop.permute.xlu0 %1134
        %1138 = vset.pattern.permute.xlu0 0
        %1139 = vperm.xlu0 %1138, %v1045
        %v1140 = vpop.permute.xlu0 %1139
        %1143 = vset.pattern.permute.xlu0 0
        %1144 = vperm.xlu0 %1143, %v1046
        %v1145 = vpop.permute.xlu0 %1144
        %1148 = vset.pattern.permute.xlu0 0
        %1149 = vperm.xlu0 %1148, %v1047
        %v1150 = vpop.permute.xlu0 %1149
        %1153 = vset.pattern.permute.xlu0 0
        %1154 = vperm.xlu0 %1153, %v1048
        %v1155 = vpop.permute.xlu0 %1154
        %1158 = vset.pattern.permute.xlu0 0
        %1159 = vperm.xlu0 %1158, %v1049
        %v1160 = vpop.permute.xlu0 %1159
        %1163 = vset.pattern.permute.xlu0 0
        %1164 = vperm.xlu0 %1163, %v1050
        %v1165 = vpop.permute.xlu0 %1164
        %1168 = vset.pattern.permute.xlu0 0
        %1169 = vperm.xlu0 %1168, %v1051
        %v1170 = vpop.permute.xlu0 %1169
        %1173 = vset.pattern.permute.xlu0 0
        %1174 = vperm.xlu0 %1173, %v1052
        %v1175 = vpop.permute.xlu0 %1174
        %1178 = vset.pattern.permute.xlu0 0
        %1179 = vperm.xlu0 %1178, %v1053
        %v1180 = vpop.permute.xlu0 %1179
        %1183 = vset.pattern.permute.xlu0 0
        %1184 = vperm.xlu0 %1183, %v1054
        %v1185 = vpop.permute.xlu0 %1184
        %1188 = vset.pattern.permute.xlu0 0
        %1189 = vperm.xlu0 %1188, %v1055
        %v1190 = vpop.permute.xlu0 %1189
        %1193 = vset.pattern.permute.xlu0 0
        %1194 = vperm.xlu0 %1193, %v1056
        %v1195 = vpop.permute.xlu0 %1194
        %1198 = vset.pattern.permute.xlu0 0
        %1199 = vperm.xlu0 %1198, %v1057
        %v1200 = vpop.permute.xlu0 %1199
        %1203 = vset.pattern.permute.xlu0 0
        %1204 = vperm.xlu0 %1203, %v1058
        %v1205 = vpop.permute.xlu0 %1204
        %1208 = vset.pattern.permute.xlu0 0
        %1209 = vperm.xlu0 %1208, %v1059
        %v1210 = vpop.permute.xlu0 %1209
        %1213 = vset.pattern.permute.xlu0 0
        %1214 = vperm.xlu0 %1213, %v1060
        %v1215 = vpop.permute.xlu0 %1214
        %1218 = vset.pattern.permute.xlu0 0
        %1219 = vperm.xlu0 %1218, %v1061
        %v1220 = vpop.permute.xlu0 %1219
        %1223 = vset.pattern.permute.xlu0 0
        %1224 = vperm.xlu0 %1223, %v1062
        %v1225 = vpop.permute.xlu0 %1224
        %1228 = vset.pattern.permute.xlu0 0
        %1229 = vperm.xlu0 %1228, %v1063
        %v1230 = vpop.permute.xlu0 %1229
        %1233 = vset.pattern.permute.xlu0 0
        %1234 = vperm.xlu0 %1233, %v1064
        %v1235 = vpop.permute.xlu0 %1234
        %1238 = vset.pattern.permute.xlu0 0
        %1239 = vperm.xlu0 %1238, %v1065
        %v1240 = vpop.permute.xlu0 %1239
        %1243 = vset.pattern.permute.xlu0 0
        %1244 = vperm.xlu0 %1243, %v1066
        %v1245 = vpop.permute.xlu0 %1244
        %1248 = vset.pattern.permute.xlu0 0
        %1249 = vperm.xlu0 %1248, %v1067
        %v1250 = vpop.permute.xlu0 %1249
        %1253 = vset.pattern.permute.xlu0 0
        %1254 = vperm.xlu0 %1253, %v1068
        %v1255 = vpop.permute.xlu0 %1254
        %1258 = vset.pattern.permute.xlu0 0
        %1259 = vperm.xlu0 %1258, %v1069
        %v1260 = vpop.permute.xlu0 %1259
        %v1262 = vsub.f32 %v1070, %v1105
        %v1263 = vsub.f32 %v1071, %v1110
        %v1264 = vsub.f32 %v1072, %v1115
        %v1265 = vsub.f32 %v1073, %v1120
        %v1266 = vsub.f32 %v1074, %v1125
        %v1267 = vsub.f32 %v1075, %v1130
        %v1268 = vsub.f32 %v1076, %v1135
        %v1269 = vsub.f32 %v1077, %v1140
        %v1270 = vsub.f32 %v1078, %v1145
        %v1271 = vsub.f32 %v1079, %v1150
        %v1272 = vsub.f32 %v1080, %v1155
        %v1273 = vsub.f32 %v1081, %v1160
        %v1274 = vsub.f32 %v1082, %v1165
        %v1275 = vsub.f32 %v1083, %v1170
        %v1276 = vsub.f32 %v1084, %v1175
        %v1277 = vsub.f32 %v1085, %v1180
        %v1278 = vsub.f32 %v1086, %v1185
        %v1279 = vsub.f32 %v1087, %v1190
        %v1280 = vsub.f32 %v1088, %v1195
        %v1281 = vsub.f32 %v1089, %v1200
        %v1282 = vsub.f32 %v1090, %v1205
        %v1283 = vsub.f32 %v1091, %v1210
        %v1284 = vsub.f32 %v1092, %v1215
        %v1285 = vsub.f32 %v1093, %v1220
        %v1286 = vsub.f32 %v1094, %v1225
        %v1287 = vsub.f32 %v1095, %v1230
        %v1288 = vsub.f32 %v1096, %v1235
        %v1289 = vsub.f32 %v1097, %v1240
        %v1290 = vsub.f32 %v1098, %v1245
        %v1291 = vsub.f32 %v1099, %v1250
        %v1292 = vsub.f32 %v1100, %v1255
        %v1293 = vsub.f32 %v1101, %v1260
        %v1294 = vmul.f32 %v1262, %v1262
        %v1295 = vmul.f32 %v1263, %v1263
        %v1296 = vmul.f32 %v1264, %v1264
        %v1297 = vmul.f32 %v1265, %v1265
        %v1298 = vmul.f32 %v1266, %v1266
        %v1299 = vmul.f32 %v1267, %v1267
        %v1300 = vmul.f32 %v1268, %v1268
        %v1301 = vmul.f32 %v1269, %v1269
        %v1302 = vmul.f32 %v1270, %v1270
        %v1303 = vmul.f32 %v1271, %v1271
        %v1304 = vmul.f32 %v1272, %v1272
        %v1305 = vmul.f32 %v1273, %v1273
        %v1306 = vmul.f32 %v1274, %v1274
        %v1307 = vmul.f32 %v1275, %v1275
        %v1308 = vmul.f32 %v1276, %v1276
        %v1309 = vmul.f32 %v1277, %v1277
        %v1310 = vmul.f32 %v1278, %v1278
        %v1311 = vmul.f32 %v1279, %v1279
        %v1312 = vmul.f32 %v1280, %v1280
        %v1313 = vmul.f32 %v1281, %v1281
        %v1314 = vmul.f32 %v1282, %v1282
        %v1315 = vmul.f32 %v1283, %v1283
        %v1316 = vmul.f32 %v1284, %v1284
        %v1317 = vmul.f32 %v1285, %v1285
        %v1318 = vmul.f32 %v1286, %v1286
        %v1319 = vmul.f32 %v1287, %v1287
        %v1320 = vmul.f32 %v1288, %v1288
        %v1321 = vmul.f32 %v1289, %v1289
        %v1322 = vmul.f32 %v1290, %v1290
        %v1323 = vmul.f32 %v1291, %v1291
        %v1324 = vmul.f32 %v1292, %v1292
        %v1325 = vmul.f32 %v1293, %v1293
        %vm1326 = vcmask 261120
        %v1327 = vsel %vm1326, %v1294, 0.0
        %1328 = vadd.xlane.f32.xlu0 %v1327
        %v1329 = vpop.xlane.xlu0 %1328
        %v1330 = vsel %vm1326, %v1295, 0.0
        %1331 = vadd.xlane.f32.xlu0 %v1330
        %v1332 = vpop.xlane.xlu0 %1331
        %v1333 = vsel %vm1326, %v1296, 0.0
        %1334 = vadd.xlane.f32.xlu0 %v1333
        %v1335 = vpop.xlane.xlu0 %1334
        %v1336 = vsel %vm1326, %v1297, 0.0
        %1337 = vadd.xlane.f32.xlu0 %v1336
        %v1338 = vpop.xlane.xlu0 %1337
        %v1339 = vsel %vm1326, %v1298, 0.0
        %1340 = vadd.xlane.f32.xlu0 %v1339
        %v1341 = vpop.xlane.xlu0 %1340
        %v1342 = vsel %vm1326, %v1299, 0.0
        %1343 = vadd.xlane.f32.xlu0 %v1342
        %v1344 = vpop.xlane.xlu0 %1343
        %v1345 = vsel %vm1326, %v1300, 0.0
        %1346 = vadd.xlane.f32.xlu0 %v1345
        %v1347 = vpop.xlane.xlu0 %1346
        %v1348 = vsel %vm1326, %v1301, 0.0
        %1349 = vadd.xlane.f32.xlu0 %v1348
        %v1350 = vpop.xlane.xlu0 %1349
        %v1351 = vsel %vm1326, %v1302, 0.0
        %1352 = vadd.xlane.f32.xlu0 %v1351
        %v1353 = vpop.xlane.xlu0 %1352
        %v1354 = vsel %vm1326, %v1303, 0.0
        %1355 = vadd.xlane.f32.xlu0 %v1354
        %v1356 = vpop.xlane.xlu0 %1355
        %v1357 = vsel %vm1326, %v1304, 0.0
        %1358 = vadd.xlane.f32.xlu0 %v1357
        %v1359 = vpop.xlane.xlu0 %1358
        %v1360 = vsel %vm1326, %v1305, 0.0
        %1361 = vadd.xlane.f32.xlu0 %v1360
        %v1362 = vpop.xlane.xlu0 %1361
        %v1363 = vsel %vm1326, %v1306, 0.0
        %1364 = vadd.xlane.f32.xlu0 %v1363
        %v1365 = vpop.xlane.xlu0 %1364
        %v1366 = vsel %vm1326, %v1307, 0.0
        %1367 = vadd.xlane.f32.xlu0 %v1366
        %v1368 = vpop.xlane.xlu0 %1367
        %v1369 = vsel %vm1326, %v1308, 0.0
        %1370 = vadd.xlane.f32.xlu0 %v1369
        %v1371 = vpop.xlane.xlu0 %1370
        %v1372 = vsel %vm1326, %v1309, 0.0
        %1373 = vadd.xlane.f32.xlu0 %v1372
        %v1374 = vpop.xlane.xlu0 %1373
        %v1375 = vsel %vm1326, %v1310, 0.0
        %1376 = vadd.xlane.f32.xlu0 %v1375
        %v1377 = vpop.xlane.xlu0 %1376
        %v1378 = vsel %vm1326, %v1311, 0.0
        %1379 = vadd.xlane.f32.xlu0 %v1378
        %v1380 = vpop.xlane.xlu0 %1379
        %v1381 = vsel %vm1326, %v1312, 0.0
        %1382 = vadd.xlane.f32.xlu0 %v1381
        %v1383 = vpop.xlane.xlu0 %1382
        %v1384 = vsel %vm1326, %v1313, 0.0
        %1385 = vadd.xlane.f32.xlu0 %v1384
        %v1386 = vpop.xlane.xlu0 %1385
        %v1387 = vsel %vm1326, %v1314, 0.0
        %1388 = vadd.xlane.f32.xlu0 %v1387
        %v1389 = vpop.xlane.xlu0 %1388
        %v1390 = vsel %vm1326, %v1315, 0.0
        %1391 = vadd.xlane.f32.xlu0 %v1390
        %v1392 = vpop.xlane.xlu0 %1391
        %v1393 = vsel %vm1326, %v1316, 0.0
        %1394 = vadd.xlane.f32.xlu0 %v1393
        %v1395 = vpop.xlane.xlu0 %1394
        %v1396 = vsel %vm1326, %v1317, 0.0
        %1397 = vadd.xlane.f32.xlu0 %v1396
        %v1398 = vpop.xlane.xlu0 %1397
        %v1399 = vsel %vm1326, %v1318, 0.0
        %1400 = vadd.xlane.f32.xlu0 %v1399
        %v1401 = vpop.xlane.xlu0 %1400
        %v1402 = vsel %vm1326, %v1319, 0.0
        %1403 = vadd.xlane.f32.xlu0 %v1402
        %v1404 = vpop.xlane.xlu0 %1403
        %v1405 = vsel %vm1326, %v1320, 0.0
        %1406 = vadd.xlane.f32.xlu0 %v1405
        %v1407 = vpop.xlane.xlu0 %1406
        %v1408 = vsel %vm1326, %v1321, 0.0
        %1409 = vadd.xlane.f32.xlu0 %v1408
        %v1410 = vpop.xlane.xlu0 %1409
        %v1411 = vsel %vm1326, %v1322, 0.0
        %1412 = vadd.xlane.f32.xlu0 %v1411
        %v1413 = vpop.xlane.xlu0 %1412
        %v1414 = vsel %vm1326, %v1323, 0.0
        %1415 = vadd.xlane.f32.xlu0 %v1414
        %v1416 = vpop.xlane.xlu0 %1415
        %v1417 = vsel %vm1326, %v1324, 0.0
        %1418 = vadd.xlane.f32.xlu0 %v1417
        %v1419 = vpop.xlane.xlu0 %1418
        %v1420 = vsel %vm1326, %v1325, 0.0
        %1421 = vadd.xlane.f32.xlu0 %v1420
        %v1422 = vpop.xlane.xlu0 %1421
        %v1423 = vadd.f32 %v1329, 1e-12
        %v1424 = vadd.f32 %v1332, 1e-12
        %v1425 = vadd.f32 %v1335, 1e-12
        %v1426 = vadd.f32 %v1338, 1e-12
        %v1427 = vadd.f32 %v1341, 1e-12
        %v1428 = vadd.f32 %v1344, 1e-12
        %v1429 = vadd.f32 %v1347, 1e-12
        %v1430 = vadd.f32 %v1350, 1e-12
        %v1431 = vadd.f32 %v1353, 1e-12
        %v1432 = vadd.f32 %v1356, 1e-12
        %v1433 = vadd.f32 %v1359, 1e-12
        %v1434 = vadd.f32 %v1362, 1e-12
        %v1435 = vadd.f32 %v1365, 1e-12
        %v1436 = vadd.f32 %v1368, 1e-12
        %v1437 = vadd.f32 %v1371, 1e-12
        %v1438 = vadd.f32 %v1374, 1e-12
        %v1439 = vadd.f32 %v1377, 1e-12
        %v1440 = vadd.f32 %v1380, 1e-12
        %v1441 = vadd.f32 %v1383, 1e-12
        %v1442 = vadd.f32 %v1386, 1e-12
        %v1443 = vadd.f32 %v1389, 1e-12
        %v1444 = vadd.f32 %v1392, 1e-12
        %v1445 = vadd.f32 %v1395, 1e-12
        %v1446 = vadd.f32 %v1398, 1e-12
        %v1447 = vadd.f32 %v1401, 1e-12
        %v1448 = vadd.f32 %v1404, 1e-12
        %v1449 = vadd.f32 %v1407, 1e-12
        %v1450 = vadd.f32 %v1410, 1e-12
        %v1451 = vadd.f32 %v1413, 1e-12
        %v1452 = vadd.f32 %v1416, 1e-12
        %v1453 = vadd.f32 %v1419, 1e-12
        %v1454 = vadd.f32 %v1422, 1e-12
        %v1455 = vrsqrt.pop %v1423
        %v1456 = vmul.f32 %v1455, %v1423
        %v1457 = vmul.f32 %v1456, %v1455
        %v1458 = vmul.f32 0.5, %v1457
        %v1459 = vsub.f32 1.5, %v1458
        %v1460 = vmul.f32 %v1455, %v1459
        %vm1461 = vweird.f32 %v1423
        %vm1462 = vweird.f32 %v1455
        %vm1463 = vmor %vm1461, %vm1462
        %v1464 = vsel %vm1463, %v1455, %v1460
        %v1465 = vrsqrt.pop %v1424
        %v1466 = vmul.f32 %v1465, %v1424
        %v1467 = vmul.f32 %v1466, %v1465
        %v1468 = vmul.f32 0.5, %v1467
        %v1469 = vsub.f32 1.5, %v1468
        %v1470 = vmul.f32 %v1465, %v1469
        %vm1471 = vweird.f32 %v1424
        %vm1472 = vweird.f32 %v1465
        %vm1473 = vmor %vm1471, %vm1472
        %v1474 = vsel %vm1473, %v1465, %v1470
        %v1475 = vrsqrt.pop %v1425
        %v1476 = vmul.f32 %v1475, %v1425
        %v1477 = vmul.f32 %v1476, %v1475
        %v1478 = vmul.f32 0.5, %v1477
        %v1479 = vsub.f32 1.5, %v1478
        %v1480 = vmul.f32 %v1475, %v1479
        %vm1481 = vweird.f32 %v1425
        %vm1482 = vweird.f32 %v1475
        %vm1483 = vmor %vm1481, %vm1482
        %v1484 = vsel %vm1483, %v1475, %v1480
        %v1485 = vrsqrt.pop %v1426
        %v1486 = vmul.f32 %v1485, %v1426
        %v1487 = vmul.f32 %v1486, %v1485
        %v1488 = vmul.f32 0.5, %v1487
        %v1489 = vsub.f32 1.5, %v1488
        %v1490 = vmul.f32 %v1485, %v1489
        %vm1491 = vweird.f32 %v1426
        %vm1492 = vweird.f32 %v1485
        %vm1493 = vmor %vm1491, %vm1492
        %v1494 = vsel %vm1493, %v1485, %v1490
        %v1495 = vrsqrt.pop %v1427
        %v1496 = vmul.f32 %v1495, %v1427
        %v1497 = vmul.f32 %v1496, %v1495
        %v1498 = vmul.f32 0.5, %v1497
        %v1499 = vsub.f32 1.5, %v1498
        %v1500 = vmul.f32 %v1495, %v1499
        %vm1501 = vweird.f32 %v1427
        %vm1502 = vweird.f32 %v1495
        %vm1503 = vmor %vm1501, %vm1502
        %v1504 = vsel %vm1503, %v1495, %v1500
        %v1505 = vrsqrt.pop %v1428
        %v1506 = vmul.f32 %v1505, %v1428
        %v1507 = vmul.f32 %v1506, %v1505
        %v1508 = vmul.f32 0.5, %v1507
        %v1509 = vsub.f32 1.5, %v1508
        %v1510 = vmul.f32 %v1505, %v1509
        %vm1511 = vweird.f32 %v1428
        %vm1512 = vweird.f32 %v1505
        %vm1513 = vmor %vm1511, %vm1512
        %v1514 = vsel %vm1513, %v1505, %v1510
        %v1515 = vrsqrt.pop %v1429
        %v1516 = vmul.f32 %v1515, %v1429
        %v1517 = vmul.f32 %v1516, %v1515
        %v1518 = vmul.f32 0.5, %v1517
        %v1519 = vsub.f32 1.5, %v1518
        %v1520 = vmul.f32 %v1515, %v1519
        %vm1521 = vweird.f32 %v1429
        %vm1522 = vweird.f32 %v1515
        %vm1523 = vmor %vm1521, %vm1522
        %v1524 = vsel %vm1523, %v1515, %v1520
        %v1525 = vrsqrt.pop %v1430
        %v1526 = vmul.f32 %v1525, %v1430
        %v1527 = vmul.f32 %v1526, %v1525
        %v1528 = vmul.f32 0.5, %v1527
        %v1529 = vsub.f32 1.5, %v1528
        %v1530 = vmul.f32 %v1525, %v1529
        %vm1531 = vweird.f32 %v1430
        %vm1532 = vweird.f32 %v1525
        %vm1533 = vmor %vm1531, %vm1532
        %v1534 = vsel %vm1533, %v1525, %v1530
        %v1535 = vrsqrt.pop %v1431
        %v1536 = vmul.f32 %v1535, %v1431
        %v1537 = vmul.f32 %v1536, %v1535
        %v1538 = vmul.f32 0.5, %v1537
        %v1539 = vsub.f32 1.5, %v1538
        %v1540 = vmul.f32 %v1535, %v1539
        %vm1541 = vweird.f32 %v1431
        %vm1542 = vweird.f32 %v1535
        %vm1543 = vmor %vm1541, %vm1542
        %v1544 = vsel %vm1543, %v1535, %v1540
        %v1545 = vrsqrt.pop %v1432
        %v1546 = vmul.f32 %v1545, %v1432
        %v1547 = vmul.f32 %v1546, %v1545
        %v1548 = vmul.f32 0.5, %v1547
        %v1549 = vsub.f32 1.5, %v1548
        %v1550 = vmul.f32 %v1545, %v1549
        %vm1551 = vweird.f32 %v1432
        %vm1552 = vweird.f32 %v1545
        %vm1553 = vmor %vm1551, %vm1552
        %v1554 = vsel %vm1553, %v1545, %v1550
        %v1555 = vrsqrt.pop %v1433
        %v1556 = vmul.f32 %v1555, %v1433
        %v1557 = vmul.f32 %v1556, %v1555
        %v1558 = vmul.f32 0.5, %v1557
        %v1559 = vsub.f32 1.5, %v1558
        %v1560 = vmul.f32 %v1555, %v1559
        %vm1561 = vweird.f32 %v1433
        %vm1562 = vweird.f32 %v1555
        %vm1563 = vmor %vm1561, %vm1562
        %v1564 = vsel %vm1563, %v1555, %v1560
        %v1565 = vrsqrt.pop %v1434
        %v1566 = vmul.f32 %v1565, %v1434
        %v1567 = vmul.f32 %v1566, %v1565
        %v1568 = vmul.f32 0.5, %v1567
        %v1569 = vsub.f32 1.5, %v1568
        %v1570 = vmul.f32 %v1565, %v1569
        %vm1571 = vweird.f32 %v1434
        %vm1572 = vweird.f32 %v1565
        %vm1573 = vmor %vm1571, %vm1572
        %v1574 = vsel %vm1573, %v1565, %v1570
        %v1575 = vrsqrt.pop %v1435
        %v1576 = vmul.f32 %v1575, %v1435
        %v1577 = vmul.f32 %v1576, %v1575
        %v1578 = vmul.f32 0.5, %v1577
        %v1579 = vsub.f32 1.5, %v1578
        %v1580 = vmul.f32 %v1575, %v1579
        %vm1581 = vweird.f32 %v1435
        %vm1582 = vweird.f32 %v1575
        %vm1583 = vmor %vm1581, %vm1582
        %v1584 = vsel %vm1583, %v1575, %v1580
        %v1585 = vrsqrt.pop %v1436
        %v1586 = vmul.f32 %v1585, %v1436
        %v1587 = vmul.f32 %v1586, %v1585
        %v1588 = vmul.f32 0.5, %v1587
        %v1589 = vsub.f32 1.5, %v1588
        %v1590 = vmul.f32 %v1585, %v1589
        %vm1591 = vweird.f32 %v1436
        %vm1592 = vweird.f32 %v1585
        %vm1593 = vmor %vm1591, %vm1592
        %v1594 = vsel %vm1593, %v1585, %v1590
        %v1595 = vrsqrt.pop %v1437
        %v1596 = vmul.f32 %v1595, %v1437
        %v1597 = vmul.f32 %v1596, %v1595
        %v1598 = vmul.f32 0.5, %v1597
        %v1599 = vsub.f32 1.5, %v1598
        %v1600 = vmul.f32 %v1595, %v1599
        %vm1601 = vweird.f32 %v1437
        %vm1602 = vweird.f32 %v1595
        %vm1603 = vmor %vm1601, %vm1602
        %v1604 = vsel %vm1603, %v1595, %v1600
        %v1605 = vrsqrt.pop %v1438
        %v1606 = vmul.f32 %v1605, %v1438
        %v1607 = vmul.f32 %v1606, %v1605
        %v1608 = vmul.f32 0.5, %v1607
        %v1609 = vsub.f32 1.5, %v1608
        %v1610 = vmul.f32 %v1605, %v1609
        %vm1611 = vweird.f32 %v1438
        %vm1612 = vweird.f32 %v1605
        %vm1613 = vmor %vm1611, %vm1612
        %v1614 = vsel %vm1613, %v1605, %v1610
        %v1615 = vrsqrt.pop %v1439
        %v1616 = vmul.f32 %v1615, %v1439
        %v1617 = vmul.f32 %v1616, %v1615
        %v1618 = vmul.f32 0.5, %v1617
        %v1619 = vsub.f32 1.5, %v1618
        %v1620 = vmul.f32 %v1615, %v1619
        %vm1621 = vweird.f32 %v1439
        %vm1622 = vweird.f32 %v1615
        %vm1623 = vmor %vm1621, %vm1622
        %v1624 = vsel %vm1623, %v1615, %v1620
        %v1625 = vrsqrt.pop %v1440
        %v1626 = vmul.f32 %v1625, %v1440
        %v1627 = vmul.f32 %v1626, %v1625
        %v1628 = vmul.f32 0.5, %v1627
        %v1629 = vsub.f32 1.5, %v1628
        %v1630 = vmul.f32 %v1625, %v1629
        %vm1631 = vweird.f32 %v1440
        %vm1632 = vweird.f32 %v1625
        %vm1633 = vmor %vm1631, %vm1632
        %v1634 = vsel %vm1633, %v1625, %v1630
        %v1635 = vrsqrt.pop %v1441
        %v1636 = vmul.f32 %v1635, %v1441
        %v1637 = vmul.f32 %v1636, %v1635
        %v1638 = vmul.f32 0.5, %v1637
        %v1639 = vsub.f32 1.5, %v1638
        %v1640 = vmul.f32 %v1635, %v1639
        %vm1641 = vweird.f32 %v1441
        %vm1642 = vweird.f32 %v1635
        %vm1643 = vmor %vm1641, %vm1642
        %v1644 = vsel %vm1643, %v1635, %v1640
        %v1645 = vrsqrt.pop %v1442
        %v1646 = vmul.f32 %v1645, %v1442
        %v1647 = vmul.f32 %v1646, %v1645
        %v1648 = vmul.f32 0.5, %v1647
        %v1649 = vsub.f32 1.5, %v1648
        %v1650 = vmul.f32 %v1645, %v1649
        %vm1651 = vweird.f32 %v1442
        %vm1652 = vweird.f32 %v1645
        %vm1653 = vmor %vm1651, %vm1652
        %v1654 = vsel %vm1653, %v1645, %v1650
        %v1655 = vrsqrt.pop %v1443
        %v1656 = vmul.f32 %v1655, %v1443
        %v1657 = vmul.f32 %v1656, %v1655
        %v1658 = vmul.f32 0.5, %v1657
        %v1659 = vsub.f32 1.5, %v1658
        %v1660 = vmul.f32 %v1655, %v1659
        %vm1661 = vweird.f32 %v1443
        %vm1662 = vweird.f32 %v1655
        %vm1663 = vmor %vm1661, %vm1662
        %v1664 = vsel %vm1663, %v1655, %v1660
        %v1665 = vrsqrt.pop %v1444
        %v1666 = vmul.f32 %v1665, %v1444
        %v1667 = vmul.f32 %v1666, %v1665
        %v1668 = vmul.f32 0.5, %v1667
        %v1669 = vsub.f32 1.5, %v1668
        %v1670 = vmul.f32 %v1665, %v1669
        %vm1671 = vweird.f32 %v1444
        %vm1672 = vweird.f32 %v1665
        %vm1673 = vmor %vm1671, %vm1672
        %v1674 = vsel %vm1673, %v1665, %v1670
        %v1675 = vrsqrt.pop %v1445
        %v1676 = vmul.f32 %v1675, %v1445
        %v1677 = vmul.f32 %v1676, %v1675
        %v1678 = vmul.f32 0.5, %v1677
        %v1679 = vsub.f32 1.5, %v1678
        %v1680 = vmul.f32 %v1675, %v1679
        %vm1681 = vweird.f32 %v1445
        %vm1682 = vweird.f32 %v1675
        %vm1683 = vmor %vm1681, %vm1682
        %v1684 = vsel %vm1683, %v1675, %v1680
        %v1685 = vrsqrt.pop %v1446
        %v1686 = vmul.f32 %v1685, %v1446
        %v1687 = vmul.f32 %v1686, %v1685
        %v1688 = vmul.f32 0.5, %v1687
        %v1689 = vsub.f32 1.5, %v1688
        %v1690 = vmul.f32 %v1685, %v1689
        %vm1691 = vweird.f32 %v1446
        %vm1692 = vweird.f32 %v1685
        %vm1693 = vmor %vm1691, %vm1692
        %v1694 = vsel %vm1693, %v1685, %v1690
        %v1695 = vrsqrt.pop %v1447
        %v1696 = vmul.f32 %v1695, %v1447
        %v1697 = vmul.f32 %v1696, %v1695
        %v1698 = vmul.f32 0.5, %v1697
        %v1699 = vsub.f32 1.5, %v1698
        %v1700 = vmul.f32 %v1695, %v1699
        %vm1701 = vweird.f32 %v1447
        %vm1702 = vweird.f32 %v1695
        %vm1703 = vmor %vm1701, %vm1702
        %v1704 = vsel %vm1703, %v1695, %v1700
        %v1705 = vrsqrt.pop %v1448
        %v1706 = vmul.f32 %v1705, %v1448
        %v1707 = vmul.f32 %v1706, %v1705
        %v1708 = vmul.f32 0.5, %v1707
        %v1709 = vsub.f32 1.5, %v1708
        %v1710 = vmul.f32 %v1705, %v1709
        %vm1711 = vweird.f32 %v1448
        %vm1712 = vweird.f32 %v1705
        %vm1713 = vmor %vm1711, %vm1712
        %v1714 = vsel %vm1713, %v1705, %v1710
        %v1715 = vrsqrt.pop %v1449
        %v1716 = vmul.f32 %v1715, %v1449
        %v1717 = vmul.f32 %v1716, %v1715
        %v1718 = vmul.f32 0.5, %v1717
        %v1719 = vsub.f32 1.5, %v1718
        %v1720 = vmul.f32 %v1715, %v1719
        %vm1721 = vweird.f32 %v1449
        %vm1722 = vweird.f32 %v1715
        %vm1723 = vmor %vm1721, %vm1722
        %v1724 = vsel %vm1723, %v1715, %v1720
        %v1725 = vrsqrt.pop %v1450
        %v1726 = vmul.f32 %v1725, %v1450
        %v1727 = vmul.f32 %v1726, %v1725
        %v1728 = vmul.f32 0.5, %v1727
        %v1729 = vsub.f32 1.5, %v1728
        %v1730 = vmul.f32 %v1725, %v1729
        %vm1731 = vweird.f32 %v1450
        %vm1732 = vweird.f32 %v1725
        %vm1733 = vmor %vm1731, %vm1732
        %v1734 = vsel %vm1733, %v1725, %v1730
        %v1735 = vrsqrt.pop %v1451
        %v1736 = vmul.f32 %v1735, %v1451
        %v1737 = vmul.f32 %v1736, %v1735
        %v1738 = vmul.f32 0.5, %v1737
        %v1739 = vsub.f32 1.5, %v1738
        %v1740 = vmul.f32 %v1735, %v1739
        %vm1741 = vweird.f32 %v1451
        %vm1742 = vweird.f32 %v1735
        %vm1743 = vmor %vm1741, %vm1742
        %v1744 = vsel %vm1743, %v1735, %v1740
        %v1745 = vrsqrt.pop %v1452
        %v1746 = vmul.f32 %v1745, %v1452
        %v1747 = vmul.f32 %v1746, %v1745
        %v1748 = vmul.f32 0.5, %v1747
        %v1749 = vsub.f32 1.5, %v1748
        %v1750 = vmul.f32 %v1745, %v1749
        %vm1751 = vweird.f32 %v1452
        %vm1752 = vweird.f32 %v1745
        %vm1753 = vmor %vm1751, %vm1752
        %v1754 = vsel %vm1753, %v1745, %v1750
        %v1755 = vrsqrt.pop %v1453
        %v1756 = vmul.f32 %v1755, %v1453
        %v1757 = vmul.f32 %v1756, %v1755
        %v1758 = vmul.f32 0.5, %v1757
        %v1759 = vsub.f32 1.5, %v1758
        %v1760 = vmul.f32 %v1755, %v1759
        %vm1761 = vweird.f32 %v1453
        %vm1762 = vweird.f32 %v1755
        %vm1763 = vmor %vm1761, %vm1762
        %v1764 = vsel %vm1763, %v1755, %v1760
        %v1765 = vrsqrt.pop %v1454
        %v1766 = vmul.f32 %v1765, %v1454
        %v1767 = vmul.f32 %v1766, %v1765
        %v1768 = vmul.f32 0.5, %v1767
        %v1769 = vsub.f32 1.5, %v1768
        %v1770 = vmul.f32 %v1765, %v1769
        %vm1771 = vweird.f32 %v1454
        %vm1772 = vweird.f32 %v1765
        %vm1773 = vmor %vm1771, %vm1772
        %v1774 = vsel %vm1773, %v1765, %v1770
        %v1775 = vmul.f32 %v1262, %v1464
        %v1776 = vmul.f32 %v1263, %v1474
        %v1777 = vmul.f32 %v1264, %v1484
        %v1778 = vmul.f32 %v1265, %v1494
        %v1779 = vmul.f32 %v1266, %v1504
        %v1780 = vmul.f32 %v1267, %v1514
        %v1781 = vmul.f32 %v1268, %v1524
        %v1782 = vmul.f32 %v1269, %v1534
        %v1783 = vmul.f32 %v1270, %v1544
        %v1784 = vmul.f32 %v1271, %v1554
        %v1785 = vmul.f32 %v1272, %v1564
        %v1786 = vmul.f32 %v1273, %v1574
        %v1787 = vmul.f32 %v1274, %v1584
        %v1788 = vmul.f32 %v1275, %v1594
        %v1789 = vmul.f32 %v1276, %v1604
        %v1790 = vmul.f32 %v1277, %v1614
        %v1791 = vmul.f32 %v1278, %v1624
        %v1792 = vmul.f32 %v1279, %v1634
        %v1793 = vmul.f32 %v1280, %v1644
        %v1794 = vmul.f32 %v1281, %v1654
        %v1795 = vmul.f32 %v1282, %v1664
        %v1796 = vmul.f32 %v1283, %v1674
        %v1797 = vmul.f32 %v1284, %v1684
        %v1798 = vmul.f32 %v1285, %v1694
        %v1799 = vmul.f32 %v1286, %v1704
        %v1800 = vmul.f32 %v1287, %v1714
        %v1801 = vmul.f32 %v1288, %v1724
        %v1802 = vmul.f32 %v1289, %v1734
        %v1803 = vmul.f32 %v1290, %v1744
        %v1804 = vmul.f32 %v1291, %v1754
        %v1805 = vmul.f32 %v1292, %v1764
        %v1806 = vmul.f32 %v1293, %v1774
        %v1807 = vld [vmem:[#allocation2] sm:$0xf]
        %v1808 = vld [vmem:[#allocation2 + $0x4] sm:$0xf]
        %v1809 = vld [vmem:[#allocation2 + $0x8] sm:$0xf]
        %v1810 = vld [vmem:[#allocation2 + $0xc] sm:$0xf]
        %v1811 = vld [vmem:[#allocation2 + $0x10] sm:$0xf]
        %v1812 = vld [vmem:[#allocation2 + $0x14] sm:$0xf]
        %v1813 = vld [vmem:[#allocation2 + $0x18] sm:$0xf]
        %v1814 = vld [vmem:[#allocation2 + $0x1c] sm:$0xf]
        %v1815 = vld [vmem:[#allocation2 + $0x20] sm:$0xf]
        %v1816 = vld [vmem:[#allocation2 + $0x24] sm:$0xf]
        %v1817 = vld [vmem:[#allocation2 + $0x28] sm:$0xf]
        %v1818 = vld [vmem:[#allocation2 + $0x2c] sm:$0xf]
        %v1819 = vld [vmem:[#allocation2 + $0x30] sm:$0xf]
        %v1820 = vld [vmem:[#allocation2 + $0x34] sm:$0xf]
        %v1821 = vld [vmem:[#allocation2 + $0x38] sm:$0xf]
        %v1822 = vld [vmem:[#allocation2 + $0x3c] sm:$0xf]
        %v1823 = vld [vmem:[#allocation2 + $0x40] sm:$0xf]
        %v1824 = vld [vmem:[#allocation2 + $0x44] sm:$0xf]
        %v1825 = vld [vmem:[#allocation2 + $0x48] sm:$0xf]
        %v1826 = vld [vmem:[#allocation2 + $0x4c] sm:$0xf]
        %v1827 = vld [vmem:[#allocation2 + $0x50] sm:$0xf]
        %v1828 = vld [vmem:[#allocation2 + $0x54] sm:$0xf]
        %v1829 = vld [vmem:[#allocation2 + $0x58] sm:$0xf]
        %v1830 = vld [vmem:[#allocation2 + $0x5c] sm:$0xf]
        %v1831 = vld [vmem:[#allocation2 + $0x60] sm:$0xf]
        %v1832 = vld [vmem:[#allocation2 + $0x64] sm:$0xf]
        %v1833 = vld [vmem:[#allocation2 + $0x68] sm:$0xf]
        %v1834 = vld [vmem:[#allocation2 + $0x6c] sm:$0xf]
        %v1835 = vld [vmem:[#allocation2 + $0x70] sm:$0xf]
        %v1836 = vld [vmem:[#allocation2 + $0x74] sm:$0xf]
        %v1837 = vld [vmem:[#allocation2 + $0x78] sm:$0xf]
        %v1838 = vld [vmem:[#allocation2 + $0x7c] sm:$0xf]
        %v1839 = vpack.c.bf16 %v1776, %v1775
        %v1840 = vpack.c.bf16 %v1778, %v1777
        %v1841 = vpack.c.bf16 %v1780, %v1779
        %v1842 = vpack.c.bf16 %v1782, %v1781
        %v1843 = vpack.c.bf16 %v1784, %v1783
        %v1844 = vpack.c.bf16 %v1786, %v1785
        %v1845 = vpack.c.bf16 %v1788, %v1787
        %v1846 = vpack.c.bf16 %v1790, %v1789
        %v1847 = vpack.c.bf16 %v1792, %v1791
        %v1848 = vpack.c.bf16 %v1794, %v1793
        %v1849 = vpack.c.bf16 %v1796, %v1795
        %v1850 = vpack.c.bf16 %v1798, %v1797
        %v1851 = vpack.c.bf16 %v1800, %v1799
        %v1852 = vpack.c.bf16 %v1802, %v1801
        %v1853 = vpack.c.bf16 %v1804, %v1803
        %v1854 = vpack.c.bf16 %v1806, %v1805
        %v1887 = vunpack.c.l.b16 %v1807
        %v1888 = vunpack.c.l.b16 %v1808
        %v1889 = vunpack.c.l.b16 %v1809
        %v1890 = vunpack.c.l.b16 %v1810
        %v1891 = vunpack.c.l.b16 %v1811
        %v1892 = vunpack.c.l.b16 %v1812
        %v1893 = vunpack.c.l.b16 %v1813
        %v1894 = vunpack.c.l.b16 %v1814
        %v1895 = vunpack.c.l.b16 %v1815
        %v1896 = vunpack.c.l.b16 %v1816
        %v1897 = vunpack.c.l.b16 %v1817
        %v1898 = vunpack.c.l.b16 %v1818
        %v1899 = vunpack.c.l.b16 %v1819
        %v1900 = vunpack.c.l.b16 %v1820
        %v1901 = vunpack.c.l.b16 %v1821
        %v1902 = vunpack.c.l.b16 %v1822
        %v1903 = vunpack.c.l.b16 %v1823
        %v1904 = vunpack.c.l.b16 %v1824
        %v1905 = vunpack.c.l.b16 %v1825
        %v1906 = vunpack.c.l.b16 %v1826
        %v1907 = vunpack.c.l.b16 %v1827
        %v1908 = vunpack.c.l.b16 %v1828
        %v1909 = vunpack.c.l.b16 %v1829
        %v1910 = vunpack.c.l.b16 %v1830
        %v1911 = vunpack.c.l.b16 %v1831
        %v1912 = vunpack.c.l.b16 %v1832
        %v1913 = vunpack.c.l.b16 %v1833
        %v1914 = vunpack.c.l.b16 %v1834
        %v1915 = vunpack.c.l.b16 %v1835
        %v1916 = vunpack.c.l.b16 %v1836
        %v1917 = vunpack.c.l.b16 %v1837
        %v1918 = vunpack.c.l.b16 %v1838
        %v1919 = vpack.c.b16 %v1888, %v1887
        %v1920 = vpack.c.b16 %v1890, %v1889
        %v1921 = vpack.c.b16 %v1892, %v1891
        %v1922 = vpack.c.b16 %v1894, %v1893
        %v1923 = vpack.c.b16 %v1896, %v1895
        %v1924 = vpack.c.b16 %v1898, %v1897
        %v1925 = vpack.c.b16 %v1900, %v1899
        %v1926 = vpack.c.b16 %v1902, %v1901
        %v1927 = vpack.c.b16 %v1904, %v1903
        %v1928 = vpack.c.b16 %v1906, %v1905
        %v1929 = vpack.c.b16 %v1908, %v1907
        %v1930 = vpack.c.b16 %v1910, %v1909
        %v1931 = vpack.c.b16 %v1912, %v1911
        %v1932 = vpack.c.b16 %v1914, %v1913
        %v1933 = vpack.c.b16 %v1916, %v1915
        %v1934 = vpack.c.b16 %v1918, %v1917
        %v1936 = vsel %vm1326, %v1919, 0
        %v1939 = vsel %vm1326, %v1920, 0
        %v1942 = vsel %vm1326, %v1921, 0
        %v1945 = vsel %vm1326, %v1922, 0
        %v1948 = vsel %vm1326, %v1923, 0
        %v1951 = vsel %vm1326, %v1924, 0
        %v1954 = vsel %vm1326, %v1925, 0
        %v1957 = vsel %vm1326, %v1926, 0
        %v1960 = vsel %vm1326, %v1927, 0
        %v1963 = vsel %vm1326, %v1928, 0
        %v1966 = vsel %vm1326, %v1929, 0
        %v1969 = vsel %vm1326, %v1930, 0
        %v1972 = vsel %vm1326, %v1931, 0
        %v1975 = vsel %vm1326, %v1932, 0
        %v1978 = vsel %vm1326, %v1933, 0
        %v1981 = vsel %vm1326, %v1934, 0
        %v1984 = vsel %vm1326, %v1839, 0
        %v1987 = vsel %vm1326, %v1840, 0
        %v1990 = vsel %vm1326, %v1841, 0
        %v1993 = vsel %vm1326, %v1842, 0
        %v1996 = vsel %vm1326, %v1843, 0
        %v1999 = vsel %vm1326, %v1844, 0
        %v2002 = vsel %vm1326, %v1845, 0
        %v2005 = vsel %vm1326, %v1846, 0
        %v2008 = vsel %vm1326, %v1847, 0
        %v2011 = vsel %vm1326, %v1848, 0
        %v2014 = vsel %vm1326, %v1849, 0
        %v2017 = vsel %vm1326, %v1850, 0
        %v2020 = vsel %vm1326, %v1851, 0
        %v2023 = vsel %vm1326, %v1852, 0
        %v2026 = vsel %vm1326, %v1853, 0
        %v2029 = vsel %vm1326, %v1854, 0
        %2031 = vmatpush.bf16.xpose.msra.mxu0 %v2005
        %2032 = vmatpush.bf16.xpose.msra.mxu0 %v2002
        %2033 = vmatpush.bf16.xpose.msra.mxu0 %v1999
        %2034 = vmatpush.bf16.xpose.msra.mxu0 %v1996
        %2035 = vmatpush.bf16.xpose.msra.mxu0 %v1993
        %2036 = vmatpush.bf16.xpose.msra.mxu0 %v1990
        %2037 = vmatpush.bf16.xpose.msra.mxu0 %v1987
        %2038 = vmatpush.bf16.xpose.msra.mxu0 %v1984
        %2039 = vmatmul.bf16.gmra.mxu0 %v1936
        %v2040 = vpop.f32.mrf.mxu0
        %v2041 = vadd.f32 0.0, %v2040
        %v2042 = vpop.f32.mrf.mxu0
        %v2043 = vadd.f32 0.0, %v2042
        %2044 = vmatmul.bf16.gmra.mxu0 %v1939
        %v2045 = vpop.f32.mrf.mxu0
        %v2046 = vadd.f32 0.0, %v2045
        %v2047 = vpop.f32.mrf.mxu0
        %v2048 = vadd.f32 0.0, %v2047
        %2049 = vmatmul.bf16.gmra.mxu0 %v1942
        %v2050 = vpop.f32.mrf.mxu0
        %v2051 = vadd.f32 0.0, %v2050
        %v2052 = vpop.f32.mrf.mxu0
        %v2053 = vadd.f32 0.0, %v2052
        %2054 = vmatmul.bf16.gmra.mxu0 %v1945
        %v2055 = vpop.f32.mrf.mxu0
        %v2056 = vadd.f32 0.0, %v2055
        %v2057 = vpop.f32.mrf.mxu0
        %v2058 = vadd.f32 0.0, %v2057
        %2059 = vmatmul.bf16.gmra.mxu0 %v1948
        %v2060 = vpop.f32.mrf.mxu0
        %v2061 = vadd.f32 0.0, %v2060
        %v2062 = vpop.f32.mrf.mxu0
        %v2063 = vadd.f32 0.0, %v2062
        %2064 = vmatmul.bf16.gmra.mxu0 %v1951
        %v2065 = vpop.f32.mrf.mxu0
        %v2066 = vadd.f32 0.0, %v2065
        %v2067 = vpop.f32.mrf.mxu0
        %v2068 = vadd.f32 0.0, %v2067
        %2069 = vmatmul.bf16.gmra.mxu0 %v1954
        %v2070 = vpop.f32.mrf.mxu0
        %v2071 = vadd.f32 0.0, %v2070
        %v2072 = vpop.f32.mrf.mxu0
        %v2073 = vadd.f32 0.0, %v2072
        %2074 = vmatmul.bf16.gmra.mxu0 %v1957
        %v2075 = vpop.f32.mrf.mxu0
        %v2076 = vadd.f32 0.0, %v2075
        %v2077 = vpop.f32.mrf.mxu0
        %v2078 = vadd.f32 0.0, %v2077
        %2079 = vmatmul.bf16.gmra.mxu0 %v1960
        %v2080 = vpop.f32.mrf.mxu0
        %v2081 = vadd.f32 0.0, %v2080
        %v2082 = vpop.f32.mrf.mxu0
        %v2083 = vadd.f32 0.0, %v2082
        %2084 = vmatmul.bf16.gmra.mxu0 %v1963
        %v2085 = vpop.f32.mrf.mxu0
        %v2086 = vadd.f32 0.0, %v2085
        %v2087 = vpop.f32.mrf.mxu0
        %v2088 = vadd.f32 0.0, %v2087
        %2089 = vmatmul.bf16.gmra.mxu0 %v1966
        %v2090 = vpop.f32.mrf.mxu0
        %v2091 = vadd.f32 0.0, %v2090
        %v2092 = vpop.f32.mrf.mxu0
        %v2093 = vadd.f32 0.0, %v2092
        %2094 = vmatmul.bf16.gmra.mxu0 %v1969
        %v2095 = vpop.f32.mrf.mxu0
        %v2096 = vadd.f32 0.0, %v2095
        %v2097 = vpop.f32.mrf.mxu0
        %v2098 = vadd.f32 0.0, %v2097
        %2099 = vmatmul.bf16.gmra.mxu0 %v1972
        %v2100 = vpop.f32.mrf.mxu0
        %v2101 = vadd.f32 0.0, %v2100
        %v2102 = vpop.f32.mrf.mxu0
        %v2103 = vadd.f32 0.0, %v2102
        %2104 = vmatmul.bf16.gmra.mxu0 %v1975
        %v2105 = vpop.f32.mrf.mxu0
        %v2106 = vadd.f32 0.0, %v2105
        %v2107 = vpop.f32.mrf.mxu0
        %v2108 = vadd.f32 0.0, %v2107
        %2109 = vmatmul.bf16.gmra.mxu0 %v1978
        %v2110 = vpop.f32.mrf.mxu0
        %v2111 = vadd.f32 0.0, %v2110
        %v2112 = vpop.f32.mrf.mxu0
        %v2113 = vadd.f32 0.0, %v2112
        %2114 = vmatmul.bf16.gmra.mxu0 %v1981
        %v2115 = vpop.f32.mrf.mxu0
        %v2116 = vadd.f32 0.0, %v2115
        %v2117 = vpop.f32.mrf.mxu0
        %v2118 = vadd.f32 0.0, %v2117
        %2119 = vdwg.mxu0
        %2120 = vmatpush.bf16.xpose.msra.mxu0 %v2029
        %2121 = vmatpush.bf16.xpose.msra.mxu0 %v2026
        %2122 = vmatpush.bf16.xpose.msra.mxu0 %v2023
        %2123 = vmatpush.bf16.xpose.msra.mxu0 %v2020
        %2124 = vmatpush.bf16.xpose.msra.mxu0 %v2017
        %2125 = vmatpush.bf16.xpose.msra.mxu0 %v2014
        %2126 = vmatpush.bf16.xpose.msra.mxu0 %v2011
        %2127 = vmatpush.bf16.xpose.msra.mxu0 %v2008
        %2128 = vmatmul.bf16.gmra.mxu0 %v1936
        %v2129 = vpop.f32.mrf.mxu0
        %v2130 = vadd.f32 0.0, %v2129
        %v2131 = vpop.f32.mrf.mxu0
        %v2132 = vadd.f32 0.0, %v2131
        %2133 = vmatmul.bf16.gmra.mxu0 %v1939
        %v2134 = vpop.f32.mrf.mxu0
        %v2135 = vadd.f32 0.0, %v2134
        %v2136 = vpop.f32.mrf.mxu0
        %v2137 = vadd.f32 0.0, %v2136
        %2138 = vmatmul.bf16.gmra.mxu0 %v1942
        %v2139 = vpop.f32.mrf.mxu0
        %v2140 = vadd.f32 0.0, %v2139
        %v2141 = vpop.f32.mrf.mxu0
        %v2142 = vadd.f32 0.0, %v2141
        %2143 = vmatmul.bf16.gmra.mxu0 %v1945
        %v2144 = vpop.f32.mrf.mxu0
        %v2145 = vadd.f32 0.0, %v2144
        %v2146 = vpop.f32.mrf.mxu0
        %v2147 = vadd.f32 0.0, %v2146
        %2148 = vmatmul.bf16.gmra.mxu0 %v1948
        %v2149 = vpop.f32.mrf.mxu0
        %v2150 = vadd.f32 0.0, %v2149
        %v2151 = vpop.f32.mrf.mxu0
        %v2152 = vadd.f32 0.0, %v2151
        %2153 = vmatmul.bf16.gmra.mxu0 %v1951
        %v2154 = vpop.f32.mrf.mxu0
        %v2155 = vadd.f32 0.0, %v2154
        %v2156 = vpop.f32.mrf.mxu0
        %v2157 = vadd.f32 0.0, %v2156
        %2158 = vmatmul.bf16.gmra.mxu0 %v1954
        %v2159 = vpop.f32.mrf.mxu0
        %v2160 = vadd.f32 0.0, %v2159
        %v2161 = vpop.f32.mrf.mxu0
        %v2162 = vadd.f32 0.0, %v2161
        %2163 = vmatmul.bf16.gmra.mxu0 %v1957
        %v2164 = vpop.f32.mrf.mxu0
        %v2165 = vadd.f32 0.0, %v2164
        %v2166 = vpop.f32.mrf.mxu0
        %v2167 = vadd.f32 0.0, %v2166
        %2168 = vmatmul.bf16.gmra.mxu0 %v1960
        %v2169 = vpop.f32.mrf.mxu0
        %v2170 = vadd.f32 0.0, %v2169
        %v2171 = vpop.f32.mrf.mxu0
        %v2172 = vadd.f32 0.0, %v2171
        %2173 = vmatmul.bf16.gmra.mxu0 %v1963
        %v2174 = vpop.f32.mrf.mxu0
        %v2175 = vadd.f32 0.0, %v2174
        %v2176 = vpop.f32.mrf.mxu0
        %v2177 = vadd.f32 0.0, %v2176
        %2178 = vmatmul.bf16.gmra.mxu0 %v1966
        %v2179 = vpop.f32.mrf.mxu0
        %v2180 = vadd.f32 0.0, %v2179
        %v2181 = vpop.f32.mrf.mxu0
        %v2182 = vadd.f32 0.0, %v2181
        %2183 = vmatmul.bf16.gmra.mxu0 %v1969
        %v2184 = vpop.f32.mrf.mxu0
        %v2185 = vadd.f32 0.0, %v2184
        %v2186 = vpop.f32.mrf.mxu0
        %v2187 = vadd.f32 0.0, %v2186
        %2188 = vmatmul.bf16.gmra.mxu0 %v1972
        %v2189 = vpop.f32.mrf.mxu0
        %v2190 = vadd.f32 0.0, %v2189
        %v2191 = vpop.f32.mrf.mxu0
        %v2192 = vadd.f32 0.0, %v2191
        %2193 = vmatmul.bf16.gmra.mxu0 %v1975
        %v2194 = vpop.f32.mrf.mxu0
        %v2195 = vadd.f32 0.0, %v2194
        %v2196 = vpop.f32.mrf.mxu0
        %v2197 = vadd.f32 0.0, %v2196
        %2198 = vmatmul.bf16.gmra.mxu0 %v1978
        %v2199 = vpop.f32.mrf.mxu0
        %v2200 = vadd.f32 0.0, %v2199
        %v2201 = vpop.f32.mrf.mxu0
        %v2202 = vadd.f32 0.0, %v2201
        %2203 = vmatmul.bf16.gmra.mxu0 %v1981
        %v2204 = vpop.f32.mrf.mxu0
        %v2205 = vadd.f32 0.0, %v2204
        %v2206 = vpop.f32.mrf.mxu0
        %v2207 = vadd.f32 0.0, %v2206
        %2208 = vdwg.mxu0
        %v2209 = vmax.f32 %v2041, %v2046
        %v2210 = vmax.f32 %v2043, %v2048
        %v2211 = vmax.f32 %v2209, %v2051
        %v2212 = vmax.f32 %v2210, %v2053
        %v2213 = vmax.f32 %v2211, %v2056
        %v2214 = vmax.f32 %v2212, %v2058
        %v2215 = vmax.f32 %v2213, %v2061
        %v2216 = vmax.f32 %v2214, %v2063
        %v2217 = vmax.f32 %v2215, %v2066
        %v2218 = vmax.f32 %v2216, %v2068
        %v2219 = vmax.f32 %v2217, %v2071
        %v2220 = vmax.f32 %v2218, %v2073
        %v2221 = vmax.f32 %v2219, %v2076
        %v2222 = vmax.f32 %v2220, %v2078
        %v2223 = vmax.f32 %v2221, %v2081
        %v2224 = vmax.f32 %v2222, %v2083
        %v2225 = vmax.f32 %v2223, %v2086
        %v2226 = vmax.f32 %v2224, %v2088
        %v2227 = vmax.f32 %v2225, %v2091
        %v2228 = vmax.f32 %v2226, %v2093
        %v2229 = vmax.f32 %v2227, %v2096
        %v2230 = vmax.f32 %v2228, %v2098
        %v2231 = vmax.f32 %v2229, %v2101
        %v2232 = vmax.f32 %v2230, %v2103
        %v2233 = vmax.f32 %v2231, %v2106
        %v2234 = vmax.f32 %v2232, %v2108
        %v2235 = vmax.f32 %v2233, %v2111
        %v2236 = vmax.f32 %v2234, %v2113
        %v2237 = vmax.f32 %v2235, %v2116
        %v2238 = vmax.f32 %v2236, %v2118
        %v2239 = vmax.f32 %v2237, %v2238
        %v2240 = vrot.slane %v2239, 4
        %v2241 = vmax.f32 %v2239, %v2240
        %v2242 = vrot.slane %v2241, 2
        %v2243 = vmax.f32 %v2241, %v2242
        %v2244 = vrot.slane %v2243, 1
        %v2245 = vmax.f32 %v2243, %v2244
        %v2246 = vmax.f32 %v2130, %v2135
        %v2247 = vmax.f32 %v2132, %v2137
        %v2248 = vmax.f32 %v2246, %v2140
        %v2249 = vmax.f32 %v2247, %v2142
        %v2250 = vmax.f32 %v2248, %v2145
        %v2251 = vmax.f32 %v2249, %v2147
        %v2252 = vmax.f32 %v2250, %v2150
        %v2253 = vmax.f32 %v2251, %v2152
        %v2254 = vmax.f32 %v2252, %v2155
        %v2255 = vmax.f32 %v2253, %v2157
        %v2256 = vmax.f32 %v2254, %v2160
        %v2257 = vmax.f32 %v2255, %v2162
        %v2258 = vmax.f32 %v2256, %v2165
        %v2259 = vmax.f32 %v2257, %v2167
        %v2260 = vmax.f32 %v2258, %v2170
        %v2261 = vmax.f32 %v2259, %v2172
        %v2262 = vmax.f32 %v2260, %v2175
        %v2263 = vmax.f32 %v2261, %v2177
        %v2264 = vmax.f32 %v2262, %v2180
        %v2265 = vmax.f32 %v2263, %v2182
        %v2266 = vmax.f32 %v2264, %v2185
        %v2267 = vmax.f32 %v2265, %v2187
        %v2268 = vmax.f32 %v2266, %v2190
        %v2269 = vmax.f32 %v2267, %v2192
        %v2270 = vmax.f32 %v2268, %v2195
        %v2271 = vmax.f32 %v2269, %v2197
        %v2272 = vmax.f32 %v2270, %v2200
        %v2273 = vmax.f32 %v2271, %v2202
        %v2274 = vmax.f32 %v2272, %v2205
        %v2275 = vmax.f32 %v2273, %v2207
        %v2276 = vmax.f32 %v2274, %v2275
        %v2277 = vrot.slane %v2276, 4
        %v2278 = vmax.f32 %v2276, %v2277
        %v2279 = vrot.slane %v2278, 2
        %v2280 = vmax.f32 %v2278, %v2279
        %v2281 = vrot.slane %v2280, 1
        %v2282 = vmax.f32 %v2280, %v2281
        %v2283 = vmin.f32 %v2245, 1.0
        %v2284 = vmin.f32 %v2282, 1.0
        %v2285 = vsub.f32 1.0, %v2283
        %v2286 = vsub.f32 1.0, %v2284
        %v2287 = vmul.f32 %v2285, 0.5
        %v2288 = vmul.f32 %v2286, 0.5
        %v2289 = vadd.f32 %v2287, 1e-05
        %v2290 = vadd.f32 %v2288, 1e-05
        %v2291 = vrcp.pop %v2289
        %v2292 = vrcp.pop %v2290
        %v2293 = vsub.f32 2.0, %v2291
        %v2294 = vsub.f32 2.0, %v2292
        %v2295 = vmul.f32 %v2291, %v2041
        %v2296 = vmul.f32 %v2292, %v2130
        %v2297 = vmul.f32 %v2291, %v2043
        %v2298 = vmul.f32 %v2292, %v2132
        %v2299 = vmul.f32 %v2291, %v2046
        %v2300 = vmul.f32 %v2292, %v2135
        %v2301 = vmul.f32 %v2291, %v2048
        %v2302 = vmul.f32 %v2292, %v2137
        %v2303 = vmul.f32 %v2291, %v2051
        %v2304 = vmul.f32 %v2292, %v2140
        %v2305 = vmul.f32 %v2291, %v2053
        %v2306 = vmul.f32 %v2292, %v2142
        %v2307 = vmul.f32 %v2291, %v2056
        %v2308 = vmul.f32 %v2292, %v2145
        %v2309 = vmul.f32 %v2291, %v2058
        %v2310 = vmul.f32 %v2292, %v2147
        %v2311 = vmul.f32 %v2291, %v2061
        %v2312 = vmul.f32 %v2292, %v2150
        %v2313 = vmul.f32 %v2291, %v2063
        %v2314 = vmul.f32 %v2292, %v2152
        %v2315 = vmul.f32 %v2291, %v2066
        %v2316 = vmul.f32 %v2292, %v2155
        %v2317 = vmul.f32 %v2291, %v2068
        %v2318 = vmul.f32 %v2292, %v2157
        %v2319 = vmul.f32 %v2291, %v2071
        %v2320 = vmul.f32 %v2292, %v2160
        %v2321 = vmul.f32 %v2291, %v2073
        %v2322 = vmul.f32 %v2292, %v2162
        %v2323 = vmul.f32 %v2291, %v2076
        %v2324 = vmul.f32 %v2292, %v2165
        %v2325 = vmul.f32 %v2291, %v2078
        %v2326 = vmul.f32 %v2292, %v2167
        %v2327 = vmul.f32 %v2291, %v2081
        %v2328 = vmul.f32 %v2292, %v2170
        %v2329 = vmul.f32 %v2291, %v2083
        %v2330 = vmul.f32 %v2292, %v2172
        %v2331 = vmul.f32 %v2291, %v2086
        %v2332 = vmul.f32 %v2292, %v2175
        %v2333 = vmul.f32 %v2291, %v2088
        %v2334 = vmul.f32 %v2292, %v2177
        %v2335 = vmul.f32 %v2291, %v2091
        %v2336 = vmul.f32 %v2292, %v2180
        %v2337 = vmul.f32 %v2291, %v2093
        %v2338 = vmul.f32 %v2292, %v2182
        %v2339 = vmul.f32 %v2291, %v2096
        %v2340 = vmul.f32 %v2292, %v2185
        %v2341 = vmul.f32 %v2291, %v2098
        %v2342 = vmul.f32 %v2292, %v2187
        %v2343 = vmul.f32 %v2291, %v2101
        %v2344 = vmul.f32 %v2292, %v2190
        %v2345 = vmul.f32 %v2291, %v2103
        %v2346 = vmul.f32 %v2292, %v2192
        %v2347 = vmul.f32 %v2291, %v2106
        %v2348 = vmul.f32 %v2292, %v2195
        %v2349 = vmul.f32 %v2291, %v2108
        %v2350 = vmul.f32 %v2292, %v2197
        %v2351 = vmul.f32 %v2291, %v2111
        %v2352 = vmul.f32 %v2292, %v2200
        %v2353 = vmul.f32 %v2291, %v2113
        %v2354 = vmul.f32 %v2292, %v2202
        %v2355 = vmul.f32 %v2291, %v2116
        %v2356 = vmul.f32 %v2292, %v2205
        %v2357 = vmul.f32 %v2291, %v2118
        %v2358 = vmul.f32 %v2292, %v2207
        %v2359 = vadd.f32 %v2293, %v2295
        %v2360 = vadd.f32 %v2294, %v2296
        %v2361 = vadd.f32 %v2293, %v2297
        %v2362 = vadd.f32 %v2294, %v2298
        %v2363 = vadd.f32 %v2293, %v2299
        %v2364 = vadd.f32 %v2294, %v2300
        %v2365 = vadd.f32 %v2293, %v2301
        %v2366 = vadd.f32 %v2294, %v2302
        %v2367 = vadd.f32 %v2293, %v2303
        %v2368 = vadd.f32 %v2294, %v2304
        %v2369 = vadd.f32 %v2293, %v2305
        %v2370 = vadd.f32 %v2294, %v2306
        %v2371 = vadd.f32 %v2293, %v2307
        %v2372 = vadd.f32 %v2294, %v2308
        %v2373 = vadd.f32 %v2293, %v2309
        %v2374 = vadd.f32 %v2294, %v2310
        %v2375 = vadd.f32 %v2293, %v2311
        %v2376 = vadd.f32 %v2294, %v2312
        %v2377 = vadd.f32 %v2293, %v2313
        %v2378 = vadd.f32 %v2294, %v2314
        %v2379 = vadd.f32 %v2293, %v2315
        %v2380 = vadd.f32 %v2294, %v2316
        %v2381 = vadd.f32 %v2293, %v2317
        %v2382 = vadd.f32 %v2294, %v2318
        %v2383 = vadd.f32 %v2293, %v2319
        %v2384 = vadd.f32 %v2294, %v2320
        %v2385 = vadd.f32 %v2293, %v2321
        %v2386 = vadd.f32 %v2294, %v2322
        %v2387 = vadd.f32 %v2293, %v2323
        %v2388 = vadd.f32 %v2294, %v2324
        %v2389 = vadd.f32 %v2293, %v2325
        %v2390 = vadd.f32 %v2294, %v2326
        %v2391 = vadd.f32 %v2293, %v2327
        %v2392 = vadd.f32 %v2294, %v2328
        %v2393 = vadd.f32 %v2293, %v2329
        %v2394 = vadd.f32 %v2294, %v2330
        %v2395 = vadd.f32 %v2293, %v2331
        %v2396 = vadd.f32 %v2294, %v2332
        %v2397 = vadd.f32 %v2293, %v2333
        %v2398 = vadd.f32 %v2294, %v2334
        %v2399 = vadd.f32 %v2293, %v2335
        %v2400 = vadd.f32 %v2294, %v2336
        %v2401 = vadd.f32 %v2293, %v2337
        %v2402 = vadd.f32 %v2294, %v2338
        %v2403 = vadd.f32 %v2293, %v2339
        %v2404 = vadd.f32 %v2294, %v2340
        %v2405 = vadd.f32 %v2293, %v2341
        %v2406 = vadd.f32 %v2294, %v2342
        %v2407 = vadd.f32 %v2293, %v2343
        %v2408 = vadd.f32 %v2294, %v2344
        %v2409 = vadd.f32 %v2293, %v2345
        %v2410 = vadd.f32 %v2294, %v2346
        %v2411 = vadd.f32 %v2293, %v2347
        %v2412 = vadd.f32 %v2294, %v2348
        %v2413 = vadd.f32 %v2293, %v2349
        %v2414 = vadd.f32 %v2294, %v2350
        %v2415 = vadd.f32 %v2293, %v2351
        %v2416 = vadd.f32 %v2294, %v2352
        %v2417 = vadd.f32 %v2293, %v2353
        %v2418 = vadd.f32 %v2294, %v2354
        %v2419 = vadd.f32 %v2293, %v2355
        %v2420 = vadd.f32 %v2294, %v2356
        %v2421 = vadd.f32 %v2293, %v2357
        %v2422 = vadd.f32 %v2294, %v2358
        %v2423 = vmul.f32 %v2359, 1.442695
        %v2424 = vpow.pop %v2423
        %v2425 = vmul.f32 %v2360, 1.442695
        %v2426 = vpow.pop %v2425
        %v2427 = vmul.f32 %v2361, 1.442695
        %v2428 = vpow.pop %v2427
        %v2429 = vmul.f32 %v2362, 1.442695
        %v2430 = vpow.pop %v2429
        %v2431 = vmul.f32 %v2363, 1.442695
        %v2432 = vpow.pop %v2431
        %v2433 = vmul.f32 %v2364, 1.442695
        %v2434 = vpow.pop %v2433
        %v2435 = vmul.f32 %v2365, 1.442695
        %v2436 = vpow.pop %v2435
        %v2437 = vmul.f32 %v2366, 1.442695
        %v2438 = vpow.pop %v2437
        %v2439 = vmul.f32 %v2367, 1.442695
        %v2440 = vpow.pop %v2439
        %v2441 = vmul.f32 %v2368, 1.442695
        %v2442 = vpow.pop %v2441
        %v2443 = vmul.f32 %v2369, 1.442695
        %v2444 = vpow.pop %v2443
        %v2445 = vmul.f32 %v2370, 1.442695
        %v2446 = vpow.pop %v2445
        %v2447 = vmul.f32 %v2371, 1.442695
        %v2448 = vpow.pop %v2447
        %v2449 = vmul.f32 %v2372, 1.442695
        %v2450 = vpow.pop %v2449
        %v2451 = vmul.f32 %v2373, 1.442695
        %v2452 = vpow.pop %v2451
        %v2453 = vmul.f32 %v2374, 1.442695
        %v2454 = vpow.pop %v2453
        %v2455 = vmul.f32 %v2375, 1.442695
        %v2456 = vpow.pop %v2455
        %v2457 = vmul.f32 %v2376, 1.442695
        %v2458 = vpow.pop %v2457
        %v2459 = vmul.f32 %v2377, 1.442695
        %v2460 = vpow.pop %v2459
        %v2461 = vmul.f32 %v2378, 1.442695
        %v2462 = vpow.pop %v2461
        %v2463 = vmul.f32 %v2379, 1.442695
        %v2464 = vpow.pop %v2463
        %v2465 = vmul.f32 %v2380, 1.442695
        %v2466 = vpow.pop %v2465
        %v2467 = vmul.f32 %v2381, 1.442695
        %v2468 = vpow.pop %v2467
        %v2469 = vmul.f32 %v2382, 1.442695
        %v2470 = vpow.pop %v2469
        %v2471 = vmul.f32 %v2383, 1.442695
        %v2472 = vpow.pop %v2471
        %v2473 = vmul.f32 %v2384, 1.442695
        %v2474 = vpow.pop %v2473
        %v2475 = vmul.f32 %v2385, 1.442695
        %v2476 = vpow.pop %v2475
        %v2477 = vmul.f32 %v2386, 1.442695
        %v2478 = vpow.pop %v2477
        %v2479 = vmul.f32 %v2387, 1.442695
        %v2480 = vpow.pop %v2479
        %v2481 = vmul.f32 %v2388, 1.442695
        %v2482 = vpow.pop %v2481
        %v2483 = vmul.f32 %v2389, 1.442695
        %v2484 = vpow.pop %v2483
        %v2485 = vmul.f32 %v2390, 1.442695
        %v2486 = vpow.pop %v2485
        %v2487 = vmul.f32 %v2391, 1.442695
        %v2488 = vpow.pop %v2487
        %v2489 = vmul.f32 %v2392, 1.442695
        %v2490 = vpow.pop %v2489
        %v2491 = vmul.f32 %v2393, 1.442695
        %v2492 = vpow.pop %v2491
        %v2493 = vmul.f32 %v2394, 1.442695
        %v2494 = vpow.pop %v2493
        %v2495 = vmul.f32 %v2395, 1.442695
        %v2496 = vpow.pop %v2495
        %v2497 = vmul.f32 %v2396, 1.442695
        %v2498 = vpow.pop %v2497
        %v2499 = vmul.f32 %v2397, 1.442695
        %v2500 = vpow.pop %v2499
        %v2501 = vmul.f32 %v2398, 1.442695
        %v2502 = vpow.pop %v2501
        %v2503 = vmul.f32 %v2399, 1.442695
        %v2504 = vpow.pop %v2503
        %v2505 = vmul.f32 %v2400, 1.442695
        %v2506 = vpow.pop %v2505
        %v2507 = vmul.f32 %v2401, 1.442695
        %v2508 = vpow.pop %v2507
        %v2509 = vmul.f32 %v2402, 1.442695
        %v2510 = vpow.pop %v2509
        %v2511 = vmul.f32 %v2403, 1.442695
        %v2512 = vpow.pop %v2511
        %v2513 = vmul.f32 %v2404, 1.442695
        %v2514 = vpow.pop %v2513
        %v2515 = vmul.f32 %v2405, 1.442695
        %v2516 = vpow.pop %v2515
        %v2517 = vmul.f32 %v2406, 1.442695
        %v2518 = vpow.pop %v2517
        %v2519 = vmul.f32 %v2407, 1.442695
        %v2520 = vpow.pop %v2519
        %v2521 = vmul.f32 %v2408, 1.442695
        %v2522 = vpow.pop %v2521
        %v2523 = vmul.f32 %v2409, 1.442695
        %v2524 = vpow.pop %v2523
        %v2525 = vmul.f32 %v2410, 1.442695
        %v2526 = vpow.pop %v2525
        %v2527 = vmul.f32 %v2411, 1.442695
        %v2528 = vpow.pop %v2527
        %v2529 = vmul.f32 %v2412, 1.442695
        %v2530 = vpow.pop %v2529
        %v2531 = vmul.f32 %v2413, 1.442695
        %v2532 = vpow.pop %v2531
        %v2533 = vmul.f32 %v2414, 1.442695
        %v2534 = vpow.pop %v2533
        %v2535 = vmul.f32 %v2415, 1.442695
        %v2536 = vpow.pop %v2535
        %v2537 = vmul.f32 %v2416, 1.442695
        %v2538 = vpow.pop %v2537
        %v2539 = vmul.f32 %v2417, 1.442695
        %v2540 = vpow.pop %v2539
        %v2541 = vmul.f32 %v2418, 1.442695
        %v2542 = vpow.pop %v2541
        %v2543 = vmul.f32 %v2419, 1.442695
        %v2544 = vpow.pop %v2543
        %v2545 = vmul.f32 %v2420, 1.442695
        %v2546 = vpow.pop %v2545
        %v2547 = vmul.f32 %v2421, 1.442695
        %v2548 = vpow.pop %v2547
        %v2549 = vmul.f32 %v2422, 1.442695
        %v2550 = vpow.pop %v2549
        %v2551 = vadd.f32 %v2424, %v2428
        %v2552 = vadd.f32 %v2551, %v2432
        %v2553 = vadd.f32 %v2552, %v2436
        %v2554 = vadd.f32 %v2553, %v2440
        %v2555 = vadd.f32 %v2554, %v2444
        %v2556 = vadd.f32 %v2555, %v2448
        %v2557 = vadd.f32 %v2556, %v2452
        %v2558 = vadd.f32 %v2557, %v2456
        %v2559 = vadd.f32 %v2558, %v2460
        %v2560 = vadd.f32 %v2559, %v2464
        %v2561 = vadd.f32 %v2560, %v2468
        %v2562 = vadd.f32 %v2561, %v2472
        %v2563 = vadd.f32 %v2562, %v2476
        %v2564 = vadd.f32 %v2563, %v2480
        %v2565 = vadd.f32 %v2564, %v2484
        %v2566 = vadd.f32 %v2565, %v2488
        %v2567 = vadd.f32 %v2566, %v2492
        %v2568 = vadd.f32 %v2567, %v2496
        %v2569 = vadd.f32 %v2568, %v2500
        %v2570 = vadd.f32 %v2569, %v2504
        %v2571 = vadd.f32 %v2570, %v2508
        %v2572 = vadd.f32 %v2571, %v2512
        %v2573 = vadd.f32 %v2572, %v2516
        %v2574 = vadd.f32 %v2573, %v2520
        %v2575 = vadd.f32 %v2574, %v2524
        %v2576 = vadd.f32 %v2575, %v2528
        %v2577 = vadd.f32 %v2576, %v2532
        %v2578 = vadd.f32 %v2577, %v2536
        %v2579 = vadd.f32 %v2578, %v2540
        %v2580 = vadd.f32 %v2579, %v2544
        %v2581 = vadd.f32 %v2580, %v2548
        %v2582 = vrot.slane %v2581, 4
        %v2583 = vadd.f32 %v2581, %v2582
        %v2584 = vrot.slane %v2583, 2
        %v2585 = vadd.f32 %v2583, %v2584
        %v2586 = vrot.slane %v2585, 1
        %v2587 = vadd.f32 %v2585, %v2586
        %v2588 = vadd.f32 %v2426, %v2430
        %v2589 = vadd.f32 %v2588, %v2434
        %v2590 = vadd.f32 %v2589, %v2438
        %v2591 = vadd.f32 %v2590, %v2442
        %v2592 = vadd.f32 %v2591, %v2446
        %v2593 = vadd.f32 %v2592, %v2450
        %v2594 = vadd.f32 %v2593, %v2454
        %v2595 = vadd.f32 %v2594, %v2458
        %v2596 = vadd.f32 %v2595, %v2462
        %v2597 = vadd.f32 %v2596, %v2466
        %v2598 = vadd.f32 %v2597, %v2470
        %v2599 = vadd.f32 %v2598, %v2474
        %v2600 = vadd.f32 %v2599, %v2478
        %v2601 = vadd.f32 %v2600, %v2482
        %v2602 = vadd.f32 %v2601, %v2486
        %v2603 = vadd.f32 %v2602, %v2490
        %v2604 = vadd.f32 %v2603, %v2494
        %v2605 = vadd.f32 %v2604, %v2498
        %v2606 = vadd.f32 %v2605, %v2502
        %v2607 = vadd.f32 %v2606, %v2506
        %v2608 = vadd.f32 %v2607, %v2510
        %v2609 = vadd.f32 %v2608, %v2514
        %v2610 = vadd.f32 %v2609, %v2518
        %v2611 = vadd.f32 %v2610, %v2522
        %v2612 = vadd.f32 %v2611, %v2526
        %v2613 = vadd.f32 %v2612, %v2530
        %v2614 = vadd.f32 %v2613, %v2534
        %v2615 = vadd.f32 %v2614, %v2538
        %v2616 = vadd.f32 %v2615, %v2542
        %v2617 = vadd.f32 %v2616, %v2546
        %v2618 = vadd.f32 %v2617, %v2550
        %v2619 = vrot.slane %v2618, 4
        %v2620 = vadd.f32 %v2618, %v2619
        %v2621 = vrot.slane %v2620, 2
        %v2622 = vadd.f32 %v2620, %v2621
        %v2623 = vrot.slane %v2622, 1
        %v2624 = vadd.f32 %v2622, %v2623
        %v2625 = vrcp.pop %v2587
        %v2626 = vrcp.pop %v2624
        %v2627 = vmul.f32 %v2424, %v2625
        %v2628 = vmul.f32 %v2426, %v2626
        %v2629 = vmul.f32 %v2428, %v2625
        %v2630 = vmul.f32 %v2430, %v2626
        %v2631 = vmul.f32 %v2432, %v2625
        %v2632 = vmul.f32 %v2434, %v2626
        %v2633 = vmul.f32 %v2436, %v2625
        %v2634 = vmul.f32 %v2438, %v2626
        %v2635 = vmul.f32 %v2440, %v2625
        %v2636 = vmul.f32 %v2442, %v2626
        %v2637 = vmul.f32 %v2444, %v2625
        %v2638 = vmul.f32 %v2446, %v2626
        %v2639 = vmul.f32 %v2448, %v2625
        %v2640 = vmul.f32 %v2450, %v2626
        %v2641 = vmul.f32 %v2452, %v2625
        %v2642 = vmul.f32 %v2454, %v2626
        %v2643 = vmul.f32 %v2456, %v2625
        %v2644 = vmul.f32 %v2458, %v2626
        %v2645 = vmul.f32 %v2460, %v2625
        %v2646 = vmul.f32 %v2462, %v2626
        %v2647 = vmul.f32 %v2464, %v2625
        %v2648 = vmul.f32 %v2466, %v2626
        %v2649 = vmul.f32 %v2468, %v2625
        %v2650 = vmul.f32 %v2470, %v2626
        %v2651 = vmul.f32 %v2472, %v2625
        %v2652 = vmul.f32 %v2474, %v2626
        %v2653 = vmul.f32 %v2476, %v2625
        %v2654 = vmul.f32 %v2478, %v2626
        %v2655 = vmul.f32 %v2480, %v2625
        %v2656 = vmul.f32 %v2482, %v2626
        %v2657 = vmul.f32 %v2484, %v2625
        %v2658 = vmul.f32 %v2486, %v2626
        %v2659 = vmul.f32 %v2488, %v2625
        %v2660 = vmul.f32 %v2490, %v2626
        %v2661 = vmul.f32 %v2492, %v2625
        %v2662 = vmul.f32 %v2494, %v2626
        %v2663 = vmul.f32 %v2496, %v2625
        %v2664 = vmul.f32 %v2498, %v2626
        %v2665 = vmul.f32 %v2500, %v2625
        %v2666 = vmul.f32 %v2502, %v2626
        %v2667 = vmul.f32 %v2504, %v2625
        %v2668 = vmul.f32 %v2506, %v2626
        %v2669 = vmul.f32 %v2508, %v2625
        %v2670 = vmul.f32 %v2510, %v2626
        %v2671 = vmul.f32 %v2512, %v2625
        %v2672 = vmul.f32 %v2514, %v2626
        %v2673 = vmul.f32 %v2516, %v2625
        %v2674 = vmul.f32 %v2518, %v2626
        %v2675 = vmul.f32 %v2520, %v2625
        %v2676 = vmul.f32 %v2522, %v2626
        %v2677 = vmul.f32 %v2524, %v2625
        %v2678 = vmul.f32 %v2526, %v2626
        %v2679 = vmul.f32 %v2528, %v2625
        %v2680 = vmul.f32 %v2530, %v2626
        %v2681 = vmul.f32 %v2532, %v2625
        %v2682 = vmul.f32 %v2534, %v2626
        %v2683 = vmul.f32 %v2536, %v2625
        %v2684 = vmul.f32 %v2538, %v2626
        %v2685 = vmul.f32 %v2540, %v2625
        %v2686 = vmul.f32 %v2542, %v2626
        %v2687 = vmul.f32 %v2544, %v2625
        %v2688 = vmul.f32 %v2546, %v2626
        %v2689 = vmul.f32 %v2548, %v2625
        %v2690 = vmul.f32 %v2550, %v2626
        %v2691 = vld [vmem:[#allocation4] sm:$0xff]
        %v2692 = vld [vmem:[#allocation4 + $0x8] sm:$0xff]
        %v2693 = vld [vmem:[#allocation4 + $0x10] sm:$0xff]
        %v2694 = vld [vmem:[#allocation4 + $0x18] sm:$0xff]
        %v2695 = vld [vmem:[#allocation4 + $0x20] sm:$0xff]
        %v2696 = vld [vmem:[#allocation4 + $0x28] sm:$0xff]
        %v2697 = vld [vmem:[#allocation4 + $0x30] sm:$0xff]
        %v2698 = vld [vmem:[#allocation4 + $0x38] sm:$0xff]
        %v2699 = vld [vmem:[#allocation4 + $0x40] sm:$0xff]
        %v2700 = vld [vmem:[#allocation4 + $0x48] sm:$0xff]
        %v2701 = vld [vmem:[#allocation4 + $0x50] sm:$0xff]
        %v2702 = vld [vmem:[#allocation4 + $0x58] sm:$0xff]
        %v2703 = vld [vmem:[#allocation4 + $0x60] sm:$0xff]
        %v2704 = vld [vmem:[#allocation4 + $0x68] sm:$0xff]
        %v2705 = vld [vmem:[#allocation4 + $0x70] sm:$0xff]
        %v2706 = vld [vmem:[#allocation4 + $0x78] sm:$0xff]
        %v2707 = vld [vmem:[#allocation4 + $0x80] sm:$0xff]
        %v2708 = vld [vmem:[#allocation4 + $0x88] sm:$0xff]
        %v2709 = vld [vmem:[#allocation4 + $0x90] sm:$0xff]
        %v2710 = vld [vmem:[#allocation4 + $0x98] sm:$0xff]
        %v2711 = vld [vmem:[#allocation4 + $0xa0] sm:$0xff]
        %v2712 = vld [vmem:[#allocation4 + $0xa8] sm:$0xff]
        %v2713 = vld [vmem:[#allocation4 + $0xb0] sm:$0xff]
        %v2714 = vld [vmem:[#allocation4 + $0xb8] sm:$0xff]
        %v2715 = vld [vmem:[#allocation4 + $0xc0] sm:$0xff]
        %v2716 = vld [vmem:[#allocation4 + $0xc8] sm:$0xff]
        %v2717 = vld [vmem:[#allocation4 + $0xd0] sm:$0xff]
        %v2718 = vld [vmem:[#allocation4 + $0xd8] sm:$0xff]
        %v2719 = vld [vmem:[#allocation4 + $0xe0] sm:$0xff]
        %v2720 = vld [vmem:[#allocation4 + $0xe8] sm:$0xff]
        %v2721 = vld [vmem:[#allocation4 + $0xf0] sm:$0xff]
        %v2722 = vld [vmem:[#allocation4 + $0xf8] sm:$0xff]
        %v2723 = vmax.f32 %v2627, %v2628
        %2724 = vmax.xlane.f32.xlu0 %v2723
        %v2725 = vpop.xlane.xlu0 %2724
        %v2726 = vmax.f32 %v2629, %v2630
        %2727 = vmax.xlane.f32.xlu0 %v2726
        %v2728 = vpop.xlane.xlu0 %2727
        %v2729 = vmax.f32 %v2631, %v2632
        %2730 = vmax.xlane.f32.xlu0 %v2729
        %v2731 = vpop.xlane.xlu0 %2730
        %v2732 = vmax.f32 %v2633, %v2634
        %2733 = vmax.xlane.f32.xlu0 %v2732
        %v2734 = vpop.xlane.xlu0 %2733
        %v2735 = vmax.f32 %v2635, %v2636
        %2736 = vmax.xlane.f32.xlu0 %v2735
        %v2737 = vpop.xlane.xlu0 %2736
        %v2738 = vmax.f32 %v2637, %v2638
        %2739 = vmax.xlane.f32.xlu0 %v2738
        %v2740 = vpop.xlane.xlu0 %2739
        %v2741 = vmax.f32 %v2639, %v2640
        %2742 = vmax.xlane.f32.xlu0 %v2741
        %v2743 = vpop.xlane.xlu0 %2742
        %v2744 = vmax.f32 %v2641, %v2642
        %2745 = vmax.xlane.f32.xlu0 %v2744
        %v2746 = vpop.xlane.xlu0 %2745
        %v2747 = vmax.f32 %v2643, %v2644
        %2748 = vmax.xlane.f32.xlu0 %v2747
        %v2749 = vpop.xlane.xlu0 %2748
        %v2750 = vmax.f32 %v2645, %v2646
        %2751 = vmax.xlane.f32.xlu0 %v2750
        %v2752 = vpop.xlane.xlu0 %2751
        %v2753 = vmax.f32 %v2647, %v2648
        %2754 = vmax.xlane.f32.xlu0 %v2753
        %v2755 = vpop.xlane.xlu0 %2754
        %v2756 = vmax.f32 %v2649, %v2650
        %2757 = vmax.xlane.f32.xlu0 %v2756
        %v2758 = vpop.xlane.xlu0 %2757
        %v2759 = vmax.f32 %v2651, %v2652
        %2760 = vmax.xlane.f32.xlu0 %v2759
        %v2761 = vpop.xlane.xlu0 %2760
        %v2762 = vmax.f32 %v2653, %v2654
        %2763 = vmax.xlane.f32.xlu0 %v2762
        %v2764 = vpop.xlane.xlu0 %2763
        %v2765 = vmax.f32 %v2655, %v2656
        %2766 = vmax.xlane.f32.xlu0 %v2765
        %v2767 = vpop.xlane.xlu0 %2766
        %v2768 = vmax.f32 %v2657, %v2658
        %2769 = vmax.xlane.f32.xlu0 %v2768
        %v2770 = vpop.xlane.xlu0 %2769
        %v2771 = vmax.f32 %v2659, %v2660
        %2772 = vmax.xlane.f32.xlu0 %v2771
        %v2773 = vpop.xlane.xlu0 %2772
        %v2774 = vmax.f32 %v2661, %v2662
        %2775 = vmax.xlane.f32.xlu0 %v2774
        %v2776 = vpop.xlane.xlu0 %2775
        %v2777 = vmax.f32 %v2663, %v2664
        %2778 = vmax.xlane.f32.xlu0 %v2777
        %v2779 = vpop.xlane.xlu0 %2778
        %v2780 = vmax.f32 %v2665, %v2666
        %2781 = vmax.xlane.f32.xlu0 %v2780
        %v2782 = vpop.xlane.xlu0 %2781
        %v2783 = vmax.f32 %v2667, %v2668
        %2784 = vmax.xlane.f32.xlu0 %v2783
        %v2785 = vpop.xlane.xlu0 %2784
        %v2786 = vmax.f32 %v2669, %v2670
        %2787 = vmax.xlane.f32.xlu0 %v2786
        %v2788 = vpop.xlane.xlu0 %2787
        %v2789 = vmax.f32 %v2671, %v2672
        %2790 = vmax.xlane.f32.xlu0 %v2789
        %v2791 = vpop.xlane.xlu0 %2790
        %v2792 = vmax.f32 %v2673, %v2674
        %2793 = vmax.xlane.f32.xlu0 %v2792
        %v2794 = vpop.xlane.xlu0 %2793
        %v2795 = vmax.f32 %v2675, %v2676
        %2796 = vmax.xlane.f32.xlu0 %v2795
        %v2797 = vpop.xlane.xlu0 %2796
        %v2798 = vmax.f32 %v2677, %v2678
        %2799 = vmax.xlane.f32.xlu0 %v2798
        %v2800 = vpop.xlane.xlu0 %2799
        %v2801 = vmax.f32 %v2679, %v2680
        %2802 = vmax.xlane.f32.xlu0 %v2801
        %v2803 = vpop.xlane.xlu0 %2802
        %v2804 = vmax.f32 %v2681, %v2682
        %2805 = vmax.xlane.f32.xlu0 %v2804
        %v2806 = vpop.xlane.xlu0 %2805
        %v2807 = vmax.f32 %v2683, %v2684
        %2808 = vmax.xlane.f32.xlu0 %v2807
        %v2809 = vpop.xlane.xlu0 %2808
        %v2810 = vmax.f32 %v2685, %v2686
        %2811 = vmax.xlane.f32.xlu0 %v2810
        %v2812 = vpop.xlane.xlu0 %2811
        %v2813 = vmax.f32 %v2687, %v2688
        %2814 = vmax.xlane.f32.xlu0 %v2813
        %v2815 = vpop.xlane.xlu0 %2814
        %v2816 = vmax.f32 %v2689, %v2690
        %2817 = vmax.xlane.f32.xlu0 %v2816
        %v2818 = vpop.xlane.xlu0 %2817
        %v2819 = vmax.f32 %v2691, %v2725
        %v2820 = vmax.f32 %v2692, %v2728
        %v2821 = vmax.f32 %v2693, %v2731
        %v2822 = vmax.f32 %v2694, %v2734
        %v2823 = vmax.f32 %v2695, %v2737
        %v2824 = vmax.f32 %v2696, %v2740
        %v2825 = vmax.f32 %v2697, %v2743
        %v2826 = vmax.f32 %v2698, %v2746
        %v2827 = vmax.f32 %v2699, %v2749
        %v2828 = vmax.f32 %v2700, %v2752
        %v2829 = vmax.f32 %v2701, %v2755
        %v2830 = vmax.f32 %v2702, %v2758
        %v2831 = vmax.f32 %v2703, %v2761
        %v2832 = vmax.f32 %v2704, %v2764
        %v2833 = vmax.f32 %v2705, %v2767
        %v2834 = vmax.f32 %v2706, %v2770
        %v2835 = vmax.f32 %v2707, %v2773
        %v2836 = vmax.f32 %v2708, %v2776
        %v2837 = vmax.f32 %v2709, %v2779
        %v2838 = vmax.f32 %v2710, %v2782
        %v2839 = vmax.f32 %v2711, %v2785
        %v2840 = vmax.f32 %v2712, %v2788
        %v2841 = vmax.f32 %v2713, %v2791
        %v2842 = vmax.f32 %v2714, %v2794
        %v2843 = vmax.f32 %v2715, %v2797
        %v2844 = vmax.f32 %v2716, %v2800
        %v2845 = vmax.f32 %v2717, %v2803
        %v2846 = vmax.f32 %v2718, %v2806
        %v2847 = vmax.f32 %v2719, %v2809
        %v2848 = vmax.f32 %v2720, %v2812
        %v2849 = vmax.f32 %v2721, %v2815
        %v2850 = vmax.f32 %v2722, %v2818
        %vm2851 = vcmask 7168
        %2852 = vst.msk [vmem:[#allocation4] sm:$0xff] %vm2851, %v2819
        %2853 = vst.msk [vmem:[#allocation4 + $0x8] sm:$0xff] %vm2851, %v2820
        %2854 = vst.msk [vmem:[#allocation4 + $0x10] sm:$0xff] %vm2851, %v2821
        %2855 = vst.msk [vmem:[#allocation4 + $0x18] sm:$0xff] %vm2851, %v2822
        %2856 = vst.msk [vmem:[#allocation4 + $0x20] sm:$0xff] %vm2851, %v2823
        %2857 = vst.msk [vmem:[#allocation4 + $0x28] sm:$0xff] %vm2851, %v2824
        %2858 = vst.msk [vmem:[#allocation4 + $0x30] sm:$0xff] %vm2851, %v2825
        %2859 = vst.msk [vmem:[#allocation4 + $0x38] sm:$0xff] %vm2851, %v2826
        %2860 = vst.msk [vmem:[#allocation4 + $0x40] sm:$0xff] %vm2851, %v2827
        %2861 = vst.msk [vmem:[#allocation4 + $0x48] sm:$0xff] %vm2851, %v2828
        %2862 = vst.msk [vmem:[#allocation4 + $0x50] sm:$0xff] %vm2851, %v2829
        %2863 = vst.msk [vmem:[#allocation4 + $0x58] sm:$0xff] %vm2851, %v2830
        %2864 = vst.msk [vmem:[#allocation4 + $0x60] sm:$0xff] %vm2851, %v2831
        %2865 = vst.msk [vmem:[#allocation4 + $0x68] sm:$0xff] %vm2851, %v2832
        %2866 = vst.msk [vmem:[#allocation4 + $0x70] sm:$0xff] %vm2851, %v2833
        %2867 = vst.msk [vmem:[#allocation4 + $0x78] sm:$0xff] %vm2851, %v2834
        %2868 = vst.msk [vmem:[#allocation4 + $0x80] sm:$0xff] %vm2851, %v2835
        %2869 = vst.msk [vmem:[#allocation4 + $0x88] sm:$0xff] %vm2851, %v2836
        %2870 = vst.msk [vmem:[#allocation4 + $0x90] sm:$0xff] %vm2851, %v2837
        %2871 = vst.msk [vmem:[#allocation4 + $0x98] sm:$0xff] %vm2851, %v2838
        %2872 = vst.msk [vmem:[#allocation4 + $0xa0] sm:$0xff] %vm2851, %v2839
        %2873 = vst.msk [vmem:[#allocation4 + $0xa8] sm:$0xff] %vm2851, %v2840
        %2874 = vst.msk [vmem:[#allocation4 + $0xb0] sm:$0xff] %vm2851, %v2841
        %2875 = vst.msk [vmem:[#allocation4 + $0xb8] sm:$0xff] %vm2851, %v2842
        %2876 = vst.msk [vmem:[#allocation4 + $0xc0] sm:$0xff] %vm2851, %v2843
        %2877 = vst.msk [vmem:[#allocation4 + $0xc8] sm:$0xff] %vm2851, %v2844
        %2878 = vst.msk [vmem:[#allocation4 + $0xd0] sm:$0xff] %vm2851, %v2845
        %2879 = vst.msk [vmem:[#allocation4 + $0xd8] sm:$0xff] %vm2851, %v2846
        %2880 = vst.msk [vmem:[#allocation4 + $0xe0] sm:$0xff] %vm2851, %v2847
        %2881 = vst.msk [vmem:[#allocation4 + $0xe8] sm:$0xff] %vm2851, %v2848
        %2882 = vst.msk [vmem:[#allocation4 + $0xf0] sm:$0xff] %vm2851, %v2849
        %2883 = vst.msk [vmem:[#allocation4 + $0xf8] sm:$0xff] %vm2851, %v2850
        // Predicated region
        $region33: #{tpu_custom_call.1} parent=27 // pred_check
          %p2884 = pneg %p190
        $region34: #{tpu_custom_call.1} parent=27 // pred_check_branch
          %2886 = sbr.rel (%p2884) target = $region36
        $region35: #{tpu_custom_call.1} parent=27 // pred_region
          %v2887 = vld [vmem:[#allocation4] sm:$0xff]
          %v2888 = vld [vmem:[#allocation4 + $0x8] sm:$0xff]
          %v2889 = vld [vmem:[#allocation4 + $0x10] sm:$0xff]
          %v2890 = vld [vmem:[#allocation4 + $0x18] sm:$0xff]
          %v2891 = vld [vmem:[#allocation4 + $0x20] sm:$0xff]
          %v2892 = vld [vmem:[#allocation4 + $0x28] sm:$0xff]
          %v2893 = vld [vmem:[#allocation4 + $0x30] sm:$0xff]
          %v2894 = vld [vmem:[#allocation4 + $0x38] sm:$0xff]
          %v2895 = vld [vmem:[#allocation4 + $0x40] sm:$0xff]
          %v2896 = vld [vmem:[#allocation4 + $0x48] sm:$0xff]
          %v2897 = vld [vmem:[#allocation4 + $0x50] sm:$0xff]
          %v2898 = vld [vmem:[#allocation4 + $0x58] sm:$0xff]
          %v2899 = vld [vmem:[#allocation4 + $0x60] sm:$0xff]
          %v2900 = vld [vmem:[#allocation4 + $0x68] sm:$0xff]
          %v2901 = vld [vmem:[#allocation4 + $0x70] sm:$0xff]
          %v2902 = vld [vmem:[#allocation4 + $0x78] sm:$0xff]
          %v2903 = vld [vmem:[#allocation4 + $0x80] sm:$0xff]
          %v2904 = vld [vmem:[#allocation4 + $0x88] sm:$0xff]
          %v2905 = vld [vmem:[#allocation4 + $0x90] sm:$0xff]
          %v2906 = vld [vmem:[#allocation4 + $0x98] sm:$0xff]
          %v2907 = vld [vmem:[#allocation4 + $0xa0] sm:$0xff]
          %v2908 = vld [vmem:[#allocation4 + $0xa8] sm:$0xff]
          %v2909 = vld [vmem:[#allocation4 + $0xb0] sm:$0xff]
          %v2910 = vld [vmem:[#allocation4 + $0xb8] sm:$0xff]
          %v2911 = vld [vmem:[#allocation4 + $0xc0] sm:$0xff]
          %v2912 = vld [vmem:[#allocation4 + $0xc8] sm:$0xff]
          %v2913 = vld [vmem:[#allocation4 + $0xd0] sm:$0xff]
          %v2914 = vld [vmem:[#allocation4 + $0xd8] sm:$0xff]
          %v2915 = vld [vmem:[#allocation4 + $0xe0] sm:$0xff]
          %v2916 = vld [vmem:[#allocation4 + $0xe8] sm:$0xff]
          %v2917 = vld [vmem:[#allocation4 + $0xf0] sm:$0xff]
          %v2918 = vld [vmem:[#allocation4 + $0xf8] sm:$0xff]
          %v2919 = vsel %vm2851, %v2887, 0.0
          %v2920 = vsel %vm2851, %v2888, 0.0
          %v2921 = vadd.f32 %v2919, %v2920
          %v2922 = vsel %vm2851, %v2889, 0.0
          %v2923 = vadd.f32 %v2921, %v2922
          %v2924 = vsel %vm2851, %v2890, 0.0
          %v2925 = vadd.f32 %v2923, %v2924
          %v2926 = vsel %vm2851, %v2891, 0.0
          %v2927 = vadd.f32 %v2925, %v2926
          %v2928 = vsel %vm2851, %v2892, 0.0
          %v2929 = vadd.f32 %v2927, %v2928
          %v2930 = vsel %vm2851, %v2893, 0.0
          %v2931 = vadd.f32 %v2929, %v2930
          %v2932 = vsel %vm2851, %v2894, 0.0
          %v2933 = vadd.f32 %v2931, %v2932
          %v2934 = vsel %vm2851, %v2895, 0.0
          %v2935 = vadd.f32 %v2933, %v2934
          %v2936 = vsel %vm2851, %v2896, 0.0
          %v2937 = vadd.f32 %v2935, %v2936
          %v2938 = vsel %vm2851, %v2897, 0.0
          %v2939 = vadd.f32 %v2937, %v2938
          %v2940 = vsel %vm2851, %v2898, 0.0
          %v2941 = vadd.f32 %v2939, %v2940
          %v2942 = vsel %vm2851, %v2899, 0.0
          %v2943 = vadd.f32 %v2941, %v2942
          %v2944 = vsel %vm2851, %v2900, 0.0
          %v2945 = vadd.f32 %v2943, %v2944
          %v2946 = vsel %vm2851, %v2901, 0.0
          %v2947 = vadd.f32 %v2945, %v2946
          %v2948 = vsel %vm2851, %v2902, 0.0
          %v2949 = vadd.f32 %v2947, %v2948
          %v2950 = vsel %vm2851, %v2903, 0.0
          %v2951 = vadd.f32 %v2949, %v2950
          %v2952 = vsel %vm2851, %v2904, 0.0
          %v2953 = vadd.f32 %v2951, %v2952
          %v2954 = vsel %vm2851, %v2905, 0.0
          %v2955 = vadd.f32 %v2953, %v2954
          %v2956 = vsel %vm2851, %v2906, 0.0
          %v2957 = vadd.f32 %v2955, %v2956
          %v2958 = vsel %vm2851, %v2907, 0.0
          %v2959 = vadd.f32 %v2957, %v2958
          %v2960 = vsel %vm2851, %v2908, 0.0
          %v2961 = vadd.f32 %v2959, %v2960
          %v2962 = vsel %vm2851, %v2909, 0.0
          %v2963 = vadd.f32 %v2961, %v2962
          %v2964 = vsel %vm2851, %v2910, 0.0
          %v2965 = vadd.f32 %v2963, %v2964
          %v2966 = vsel %vm2851, %v2911, 0.0
          %v2967 = vadd.f32 %v2965, %v2966
          %v2968 = vsel %vm2851, %v2912, 0.0
          %v2969 = vadd.f32 %v2967, %v2968
          %v2970 = vsel %vm2851, %v2913, 0.0
          %v2971 = vadd.f32 %v2969, %v2970
          %v2972 = vsel %vm2851, %v2914, 0.0
          %v2973 = vadd.f32 %v2971, %v2972
          %v2974 = vsel %vm2851, %v2915, 0.0
          %v2975 = vadd.f32 %v2973, %v2974
          %v2976 = vsel %vm2851, %v2916, 0.0
          %v2977 = vadd.f32 %v2975, %v2976
          %v2978 = vsel %vm2851, %v2917, 0.0
          %v2979 = vadd.f32 %v2977, %v2978
          %v2980 = vsel %vm2851, %v2918, 0.0
          %v2981 = vadd.f32 %v2979, %v2980
          %2982 = vadd.xlane.f32.xlu0 %v2981
          %v2983 = vpop.xlane.xlu0 %2982
          %v2984 = vrot.slane %v2983, 4
          %v2985 = vadd.f32 %v2983, %v2984
          %v2986 = vrot.slane %v2985, 2
          %v2987 = vadd.f32 %v2985, %v2986
          %v2988 = vrot.slane %v2987, 1
          %v2989 = vadd.f32 %v2987, %v2988
          %s2990 = vtos %v2989
          %v2991 = vstv %s2990
          %v2992 = vmul.f32 %v2991, 0.00390625
          %2993 = vst [vmem:[%s174] sm:$0xff] %v2992
        $region36: #{tpu_custom_call.1} parent=27 // pred_fallthru
          _
        %s2994 = sand.u32 %s90, 1
        %s2995 = scalar_lea.sflag [#allocation6], %s2994
        %s2996 = sand.u32 %s90, 1
        %s2997 = smul.addr %s2996, 8
        %s2998 = scalar_lea.vmem [#allocation5], %s2997
        // Predicated region
        $region37: #{tpu_custom_call.1} parent=27 // pred_check
          %p2999 = pneg %p100
        $region38: #{tpu_custom_call.1} parent=27 // pred_check_branch
          %3001 = sbr.rel (%p2999) target = $region40
        $region39: #{tpu_custom_call.1} parent=27 // pred_region
          %3003 = vsyncadd %s2995, 0
          %s3004 = smul.addr %s20, 8
          %s3005 = scalar_lea.hbm %s2, %s3004
          %s3007 = sshll.u32 %s2998, 4
          %s3008 = int_to_ptr.vmem [resolvable:$true] %s3007
          %s3009 = sshll.u32 %s3005, 4
          %s3010 = int_to_ptr.hbm [resolvable:$true] %s3009
          %3012 = dma.vmem_to_hbm [thread:$0]  %s3008, 128, %s3010, %s2995
        $region40: #{tpu_custom_call.1} parent=27 // pred_fallthru
          _
      $region28: #{tpu_custom_call.1} parent=5 // pred_fallthru
        _
      %p3013 = scmp.le.s32.totalorder 2, %s11
      // Predicated region
      $region41: #{tpu_custom_call.1} parent=5 // pred_check
        %p3014 = pneg %p3013
      $region42: #{tpu_custom_call.1} parent=5 // pred_check_branch
        %3016 = sbr.rel (%p3014) target = $region44
      $region43: #{tpu_custom_call.1} parent=5 // pred_region
        %s3017 = ssub.s32 %s11, 2
        // Predicated region
        $region45: #{tpu_custom_call.1} parent=43 // pred_check
          %p3018 = pneg %p106
        $region46: #{tpu_custom_call.1} parent=43 // pred_check_branch
          %3020 = sbr.rel (%p3018) target = $region48
        $region47: #{tpu_custom_call.1} parent=43 // pred_region
          %s3021 = sand.u32 %s91, 1
          %s3022 = scalar_lea.sflag [#allocation6], %s3021
          %s3023 = sand.u32 %s91, 1
          %s3024 = smul.addr %s3023, 8
          %s3025 = scalar_lea.vmem [#allocation5], %s3024
          %3027 = dma.done %s3022, 128
        $region48: #{tpu_custom_call.1} parent=43 // pred_fallthru
          _
      $region44: #{tpu_custom_call.1} parent=5 // pred_fallthru
        _
    $region6: #{tpu_custom_call.1} parent=1 // loop_footer
      %s15 = sadd.s32 1, %s11
    $region7: #{tpu_custom_call.1} parent=1 // loop_footer_branch
      %10 = sbr.rel target = $region3
    $region8: #{tpu_custom_call.1} parent=1 // loop_exit
      _
    %3028 = vsyncpa [#allocation6], 1
    %s3029 = scalar_lea.sflag [#allocation6], 1
    %3030 = vsyncpa %s3029, 1

</llo_original>
